<compile_context>
chip_gen: v7x
topology: tpu7x:2x2x1
jax: 0.10.0
libtpu: 0.0.40
codegen_flags: <defaults>
</compile_context>

<pallas_src>
import functools

import jax
import jax.numpy as jnp
from jax.experimental import pallas as pl
from jax.experimental.pallas import tpu as pltpu


# ---------------------------------------------------------------------------
# Kernel 1: LSTM recurrence + fc + log_softmax  ->  z (B, E)
# ---------------------------------------------------------------------------
def lstm_fc_kernel(x_ref, w_ih_ref, w_hh_ref, b_g_ref, w_fc_ref, b_fc_ref,
                   z_ref, gx_ref):
    """All-VMEM (shapes are small).

    x_ref:    (T*B, I)  time-major LSTM inputs, rows [t*B : (t+1)*B] = step t
    w_ih_ref: (I, 4H)   input->gates  (gate order i,f,g,o like PyTorch)
    w_hh_ref: (H, 4H)   hidden->gates
    b_g_ref:  (1, 4H)   b_ih + b_hh combined
    w_fc_ref: (H, E)    final linear
    b_fc_ref: (1, E)
    z_ref:    (B, E)    output: log_softmax(fc(h_T))
    gx_ref:   (T*B,4H)  VMEM scratch for the hoisted input projection
    """
    H = w_hh_ref.shape[0]
    B = z_ref.shape[0]
    T = x_ref.shape[0] // B

    # Hoisted input projection: ONE big matmul feeds every timestep, so the
    # strictly-serial recurrence only carries the h @ W_hh dependency.
    gx_ref[...] = (jnp.dot(x_ref[...], w_ih_ref[...],
                           preferred_element_type=jnp.float32)
                   + b_g_ref[...])

    w_hh = w_hh_ref[...]

    def step(t, carry):
        h, c = carry
        row = pl.multiple_of(t * B, B)
        gates = gx_ref[pl.ds(row, B), :] + jnp.dot(
            h, w_hh, preferred_element_type=jnp.float32)          # (B, 4H)
        # Two full-width EUP passes instead of four narrow per-gate passes.
        sig = jax.nn.sigmoid(gates)
        th = jnp.tanh(gates)
        i_g = sig[:, 0:H]
        f_g = sig[:, H:2 * H]
        g_g = th[:, 2 * H:3 * H]
        o_g = sig[:, 3 * H:4 * H]
        c_new = f_g * c + i_g * g_g
        h_new = o_g * jnp.tanh(c_new)
        return (h_new, c_new)

    h0 = jnp.zeros((B, H), jnp.float32)
    c0 = jnp.zeros((B, H), jnp.float32)
    h, _ = jax.lax.fori_loop(0, T, step, (h0, c0), unroll=True)

    # fc on the last timestep hidden state, then log_softmax along dim=1.
    z = jnp.dot(h, w_fc_ref[...], preferred_element_type=jnp.float32) + b_fc_ref[...]
    m = jnp.max(z, axis=1, keepdims=True)
    lse = m + jnp.log(jnp.sum(jnp.exp(z - m), axis=1, keepdims=True))
    z_ref[...] = z - lse


# ---------------------------------------------------------------------------
# Kernel 2: entity scoring, tiled over NE:  sigmoid(z @ emb_e^T + b)
# ---------------------------------------------------------------------------
def score_kernel(z_ref, emb_t_ref, b_ent_ref, out_ref):
    """z_ref: (B, E) f32 (resident); emb_t_ref: (E, TN) bf16 block;
    b_ent_ref: (1, TN) f32 block; out_ref: (B, TN) f32 block."""
    z_bf = z_ref[...].astype(jnp.bfloat16)
    logits = jnp.dot(z_bf, emb_t_ref[...],
                     preferred_element_type=jnp.float32) + b_ent_ref[...]
    out_ref[...] = jax.nn.sigmoid(logits)


# ---------------------------------------------------------------------------
# Wrapper
# ---------------------------------------------------------------------------
@functools.partial(jax.jit, static_argnames=("batch_size", "timesteps",
                                             "entity_tile"))
def lstm_model_forward(e1, rel, params, *, batch_size, timesteps,
                       entity_tile=2048):
    emb_e = params["emb_e"]          # (NE, E)
    emb_rel = params["emb_rel"]      # (NR, E)
    NE, E = emb_e.shape
    H = params["w_hh"].shape[0]
    B, T = batch_size, timesteps

    # ---- glue: embedding gather + reshape to time-major (T*B, I) ----
    e1_emb = emb_e[e1[:, 0]]         # (B, E)   (padding_idx=0 row is zero)
    rel_emb = emb_rel[rel[:, 0]]     # (B, E)
    stacked = jnp.concatenate([e1_emb, rel_emb], axis=1)         # (B, 2E)
    x = stacked.reshape(B, T, -1)                                # (B, T, I)
    x = jnp.transpose(x, (1, 0, 2)).reshape(T * B, -1)           # (T*B, I)
    x = x.astype(jnp.float32)

    vmem = pl.BlockSpec(memory_space=pltpu.MemorySpace.VMEM)

    # ---- kernel 1: LSTM + fc + log_softmax -> z (B, E) ----
    z = pl.pallas_call(
        lstm_fc_kernel,
        out_shape=jax.ShapeDtypeStruct((B, E), jnp.float32),
        in_specs=[vmem] * 6,
        out_specs=vmem,
        scratch_shapes=[pltpu.VMEM((T * B, 4 * H), jnp.float32)],
    )(x, params["w_ih"], params["w_hh"], params["b_gates"],
      params["w_fc"], params["b_fc"])

    # ---- kernel 2: entity scoring, streamed over NE ----
    # Lane-dense tile, multiple of 128; keep it modest so double-buffered
    # blocks fit v7x's smaller VMEM (raise entity_tile on v5e/v6e if wanted).
    TN = min(entity_tile, pl.cdiv(NE, 128) * 128)
    TN = max(128, (TN // 128) * 128)
    NE_pad = pl.cdiv(NE, TN) * TN

    # Derive emb_e^T from emb_e (no separately-stored copy that can drift),
    # cast to bf16 to halve HBM bytes on the bandwidth-bound scoring matmul.
    emb_t = emb_e.T.astype(jnp.bfloat16)                         # (E, NE)
    b_ent = params["b_ent"].reshape(1, NE).astype(jnp.float32)   # (1, NE)
    if NE_pad != NE:
        emb_t = jnp.pad(emb_t, ((0, 0), (0, NE_pad - NE)))
        b_ent = jnp.pad(b_ent, ((0, 0), (0, NE_pad - NE)))

    # Double-buffered per-block footprint (emb block bf16 + bias + out) plus
    # the resident z block.
    block_bytes = 2 * (E * TN * 2 + TN * 4 + B * TN * 4) + 2 * B * E * 4
    vmem_limit = int(min(max(4 * block_bytes, 8 << 20), 48 << 20))

    cost = pl.CostEstimate(
        flops=2 * B * E * NE_pad,
        transcendentals=B * NE_pad,
        bytes_accessed=E * NE_pad * 2 + NE_pad * 4 + B * NE_pad * 4 + B * E * 4,
    )

    scores = pl.pallas_call(
        score_kernel,
        out_shape=jax.ShapeDtypeStruct((B, NE_pad), jnp.float32),
        grid=(NE_pad // TN,),
        in_specs=[
            pl.BlockSpec((B, E), lambda j: (0, 0)),      # z: resident
            pl.BlockSpec((E, TN), lambda j: (0, j)),     # emb_e^T: streamed
            pl.BlockSpec((1, TN), lambda j: (0, j)),     # bias: streamed
        ],
        out_specs=pl.BlockSpec((B, TN), lambda j: (0, j)),
        compiler_params=pltpu.CompilerParams(
            dimension_semantics=("parallel",),           # 2 TCs on v7x
            vmem_limit_bytes=vmem_limit,
        ),
        cost_estimate=cost,
    )(z, emb_t, b_ent)

    # Drop the padded (lane-alignment) entity columns.
    return scores[:, :NE]


# ---------------------------------------------------------------------------
# Parameter construction (mirrors the PyTorch module's parameters)
# ---------------------------------------------------------------------------
def make_params(key, *, num_entities, num_relations, embedding_dim,
                hidden_size, timesteps, num_layers=1):
    input_size = embedding_dim // timesteps * num_layers * 2
    ks = jax.random.split(key, 8)
    scale = 0.1

    emb_e = scale * jax.random.normal(ks[0], (num_entities, embedding_dim), jnp.float32)
    emb_e = emb_e.at[0].set(0.0)      # padding_idx=0
    emb_rel = scale * jax.random.normal(ks[1], (num_relations, embedding_dim), jnp.float32)
    emb_rel = emb_rel.at[0].set(0.0)  # padding_idx=0

    # LSTM weights in right-multiply layout (in_dim, 4H), gate order i,f,g,o.
    w_ih = scale * jax.random.normal(ks[2], (input_size, 4 * hidden_size), jnp.float32)
    w_hh = scale * jax.random.normal(ks[3], (hidden_size, 4 * hidden_size), jnp.float32)
    b_ih = scale * jax.random.normal(ks[4], (4 * hidden_size,), jnp.float32)
    b_hh = scale * jax.random.normal(ks[5], (4 * hidden_size,), jnp.float32)
    b_gates = (b_ih + b_hh).reshape(1, 4 * hidden_size)

    w_fc = scale * jax.random.normal(ks[6], (hidden_size, embedding_dim), jnp.float32)
    b_fc = scale * jax.random.normal(ks[7], (1, embedding_dim), jnp.float32)

    b_ent = jnp.zeros((num_entities,), jnp.float32)   # register_parameter('b', zeros)

    return {
        "emb_e": emb_e,
        "emb_rel": emb_rel,
        "w_ih": w_ih,
        "w_hh": w_hh,
        "b_gates": b_gates,
        "w_fc": w_fc,
        "b_fc": b_fc,
        "b_ent": b_ent,
    }


if __name__ == "__main__":
    # Small shapes consistent with the module (num_layers must be 1 for the
    # PyTorch reshape math to be consistent).  NE chosen lane-dense; in real
    # serving B should be raised to 128-256 to fill the MXU rows.
    batch_size = 8
    timesteps = 8
    embedding_dim = 128
    hidden_size = 64
    num_entities = 256
    num_relations = 32
    assert embedding_dim % timesteps == 0

    key = jax.random.PRNGKey(0)
    kp, ke, kr = jax.random.split(key, 3)

    params = make_params(kp,
                         num_entities=num_entities,
                         num_relations=num_relations,
                         embedding_dim=embedding_dim,
                         hidden_size=hidden_size,
                         timesteps=timesteps)

    e1 = jax.random.randint(ke, (batch_size, 1), 0, num_entities, dtype=jnp.int32)
    rel = jax.random.randint(kr, (batch_size, 1), 0, num_relations, dtype=jnp.int32)

    pred = lstm_model_forward(e1, rel, params,
                              batch_size=batch_size, timesteps=timesteps)
    pred = jax.block_until_ready(pred)
    assert pred.shape == (batch_size, num_entities)
    assert bool(jnp.all(jnp.isfinite(pred)))
    assert bool(jnp.all((pred > 0.0) & (pred < 1.0)))
    print("KERNEL_OK")
</pallas_src>

<mosaic_0001>
module attributes {stable_mosaic.version = 11 : i64} {
  func.func @score_kernel(%arg0: i32, %arg1: memref<8x128xf32, #tpu.memory_space<vmem>>, %arg2: memref<128x256xbf16, #tpu.memory_space<vmem>>, %arg3: memref<1x256xf32, #tpu.memory_space<vmem>>, %arg4: memref<8x256xf32, #tpu.memory_space<vmem>>) attributes {dimension_semantics = [#tpu.dimension_semantics<parallel>], iteration_bounds = array<i64: 1>, scalar_prefetch = 0 : i64, scratch_operands = 0 : i64, tpu.core_type = #tpu.core_type<tc>, window_params = [{pipeline_mode = #tpu.pipeline_mode<synchronous>, transform_indices = @transform_0, window_bounds = array<i64: 8, 128>}, {transform_indices = @transform_1, window_bounds = array<i64: 128, 256>}, {transform_indices = @transform_2, window_bounds = array<i64: 1, 256>}, {transform_indices = @transform_3, window_bounds = array<i64: 8, 256>}]} {
    %c0 = arith.constant 0 : index
    %c0_0 = arith.constant 0 : index
    %0 = vector.load %arg1[%c0, %c0_0] : memref<8x128xf32, #tpu.memory_space<vmem>>, vector<8x128xf32>
    %1 = arith.truncf %0 : vector<8x128xf32> to vector<8x128xbf16>
    %c0_1 = arith.constant 0 : index
    %c0_2 = arith.constant 0 : index
    %2 = vector.load %arg2[%c0_1, %c0_2] : memref<128x256xbf16, #tpu.memory_space<vmem>>, vector<128x256xbf16>
    %cst = arith.constant dense<0.000000e+00> : vector<8x256xf32>
    %3 = tpu.matmul %1, %2, %cst {dimension_numbers = #tpu.dot_dimension_numbers<[1], [0], [0], [1], [0, 0, 1, 1], [], []>} : vector<8x128xbf16>, vector<128x256xbf16>, vector<8x256xf32> -> vector<8x256xf32>
    %c0_3 = arith.constant 0 : index
    %c0_4 = arith.constant 0 : index
    %4 = vector.load %arg3[%c0_3, %c0_4] : memref<1x256xf32, #tpu.memory_space<vmem>>, vector<1x256xf32>
    %5 = vector.broadcast %4 : vector<1x256xf32> to vector<8x256xf32>
    %6 = arith.addf %3, %5 : vector<8x256xf32>
    %7 = arith.negf %6 : vector<8x256xf32>
    %8 = math.exp %7 : vector<8x256xf32>
    %cst_5 = arith.constant 1.000000e+00 : f32
    %9 = vector.broadcast %cst_5 : f32 to vector<8x256xf32>
    %10 = arith.addf %9, %8 : vector<8x256xf32>
    %11 = arith.divf %9, %10 : vector<8x256xf32>
    %c0_6 = arith.constant 0 : index
    %c0_7 = arith.constant 0 : index
    %12 = vector.load %arg4[%c0_6, %c0_7] : memref<8x256xf32, #tpu.memory_space<vmem>>, vector<8x256xf32>
    tpu.vector_store %arg4[%c0_6, %c0_7], %11 {strides = array<i32>} : memref<8x256xf32, #tpu.memory_space<vmem>>, vector<8x256xf32>,
    return
  }
  func.func @transform_0(%arg0: i32) -> (i32, i32) {
    %c0_i32 = arith.constant 0 : i32
    %c0_i32_0 = arith.constant 0 : i32
    %c0_i32_1 = arith.constant 0 : i32
    return %c0_i32, %c0_i32_0 : i32, i32
  }
  func.func @transform_1(%arg0: i32) -> (i32, i32) {
    %c0_i32 = arith.constant 0 : i32
    %c0_i32_0 = arith.constant 0 : i32
    return %c0_i32, %arg0 : i32, i32
  }
  func.func @transform_2(%arg0: i32) -> (i32, i32) {
    %c0_i32 = arith.constant 0 : i32
    %c0_i32_0 = arith.constant 0 : i32
    return %c0_i32, %arg0 : i32, i32
  }
  func.func @transform_3(%arg0: i32) -> (i32, i32) {
    %c0_i32 = arith.constant 0 : i32
    %c0_i32_0 = arith.constant 0 : i32
    return %c0_i32, %arg0 : i32, i32
  }
}

module attributes {stable_mosaic.version = 11 : i64} {
  func.func @lstm_fc_kernel(%arg0: memref<64x32xf32, #tpu.memory_space<vmem>>, %arg1: memref<32x256xf32, #tpu.memory_space<vmem>>, %arg2: memref<64x256xf32, #tpu.memory_space<vmem>>, %arg3: memref<1x256xf32, #tpu.memory_space<vmem>>, %arg4: memref<64x128xf32, #tpu.memory_space<vmem>>, %arg5: memref<1x128xf32, #tpu.memory_space<vmem>>, %arg6: memref<8x128xf32, #tpu.memory_space<vmem>>, %arg7: memref<64x256xf32, #tpu.memory_space<vmem>>) attributes {dimension_semantics = [], scalar_prefetch = 0 : i64, scratch_operands = 1 : i64, tpu.core_type = #tpu.core_type<tc>} {
    %c0 = arith.constant 0 : index
    %c0_0 = arith.constant 0 : index
    %0 = vector.load %arg0[%c0, %c0_0] : memref<64x32xf32, #tpu.memory_space<vmem>>, vector<64x32xf32>
    %c0_1 = arith.constant 0 : index
    %c0_2 = arith.constant 0 : index
    %1 = vector.load %arg1[%c0_1, %c0_2] : memref<32x256xf32, #tpu.memory_space<vmem>>, vector<32x256xf32>
    %cst = arith.constant dense<0.000000e+00> : vector<64x256xf32>
    %2 = tpu.matmul %0, %1, %cst {dimension_numbers = #tpu.dot_dimension_numbers<[1], [0], [0], [1], [0, 0, 1, 1], [], []>} : vector<64x32xf32>, vector<32x256xf32>, vector<64x256xf32> -> vector<64x256xf32>
    %c0_3 = arith.constant 0 : index
    %c0_4 = arith.constant 0 : index
    %3 = vector.load %arg3[%c0_3, %c0_4] : memref<1x256xf32, #tpu.memory_space<vmem>>, vector<1x256xf32>
    %4 = vector.broadcast %3 : vector<1x256xf32> to vector<64x256xf32>
    %5 = arith.addf %2, %4 : vector<64x256xf32>
    %c0_5 = arith.constant 0 : index
    %c0_6 = arith.constant 0 : index
    %6 = vector.load %arg7[%c0_5, %c0_6] : memref<64x256xf32, #tpu.memory_space<vmem>>, vector<64x256xf32>
    tpu.vector_store %arg7[%c0_5, %c0_6], %5 {strides = array<i32>} : memref<64x256xf32, #tpu.memory_space<vmem>>, vector<64x256xf32>,
    %c0_7 = arith.constant 0 : index
    %c0_8 = arith.constant 0 : index
    %7 = vector.load %arg2[%c0_7, %c0_8] : memref<64x256xf32, #tpu.memory_space<vmem>>, vector<64x256xf32>
    %cst_9 = arith.constant 0.000000e+00 : f32
    %8 = vector.broadcast %cst_9 : f32 to vector<8x64xf32>
    %cst_10 = arith.constant 0.000000e+00 : f32
    %9 = vector.broadcast %cst_10 : f32 to vector<8x64xf32>
    %c0_i32 = arith.constant 0 : i32
    %c8_i32 = arith.constant 8 : i32
    %10 = arith.muli %c0_i32, %c8_i32 : i32
    %11 = tpu.assume_multiple %10, 8 : i32
    %12 = arith.index_cast %11 : i32 to index
    %c0_11 = arith.constant 0 : index
    %13 = vector.load %arg7[%12, %c0_11] : memref<64x256xf32, #tpu.memory_space<vmem>>, vector<8x256xf32>
    %cst_12 = arith.constant dense<0.000000e+00> : vector<8x256xf32>
    %14 = tpu.matmul %8, %7, %cst_12 {dimension_numbers = #tpu.dot_dimension_numbers<[1], [0], [0], [1], [0, 0, 1, 1], [], []>} : vector<8x64xf32>, vector<64x256xf32>, vector<8x256xf32> -> vector<8x256xf32>
    %15 = arith.addf %13, %14 : vector<8x256xf32>
    %16 = arith.negf %15 : vector<8x256xf32>
    %17 = math.exp %16 : vector<8x256xf32>
    %cst_13 = arith.constant 1.000000e+00 : f32
    %18 = vector.broadcast %cst_13 : f32 to vector<8x256xf32>
    %19 = arith.addf %18, %17 : vector<8x256xf32>
    %20 = arith.divf %18, %19 : vector<8x256xf32>
    %21 = math.tanh %15 : vector<8x256xf32>
    %22 = vector.extract_strided_slice %20 {offsets = [0, 0], sizes = [8, 64], strides = [1, 1]} : vector<8x256xf32> to vector<8x64xf32>
    %23 = vector.extract_strided_slice %20 {offsets = [0, 64], sizes = [8, 64], strides = [1, 1]} : vector<8x256xf32> to vector<8x64xf32>
    %24 = vector.extract_strided_slice %21 {offsets = [0, 128], sizes = [8, 64], strides = [1, 1]} : vector<8x256xf32> to vector<8x64xf32>
    %25 = vector.extract_strided_slice %20 {offsets = [0, 192], sizes = [8, 64], strides = [1, 1]} : vector<8x256xf32> to vector<8x64xf32>
    %26 = arith.mulf %23, %9 : vector<8x64xf32>
    %27 = arith.mulf %22, %24 : vector<8x64xf32>
    %28 = arith.addf %26, %27 : vector<8x64xf32>
    %29 = math.tanh %28 : vector<8x64xf32>
    %30 = arith.mulf %25, %29 : vector<8x64xf32>
    %c1_i32 = arith.constant 1 : i32
    %c8_i32_14 = arith.constant 8 : i32
    %31 = arith.muli %c1_i32, %c8_i32_14 : i32
    %32 = tpu.assume_multiple %31, 8 : i32
    %33 = arith.index_cast %32 : i32 to index
    %c0_15 = arith.constant 0 : index
    %34 = vector.load %arg7[%33, %c0_15] : memref<64x256xf32, #tpu.memory_space<vmem>>, vector<8x256xf32>
    %cst_16 = arith.constant dense<0.000000e+00> : vector<8x256xf32>
    %35 = tpu.matmul %30, %7, %cst_16 {dimension_numbers = #tpu.dot_dimension_numbers<[1], [0], [0], [1], [0, 0, 1, 1], [], []>} : vector<8x64xf32>, vector<64x256xf32>, vector<8x256xf32> -> vector<8x256xf32>
    %36 = arith.addf %34, %35 : vector<8x256xf32>
    %37 = arith.negf %36 : vector<8x256xf32>
    %38 = math.exp %37 : vector<8x256xf32>
    %cst_17 = arith.constant 1.000000e+00 : f32
    %39 = vector.broadcast %cst_17 : f32 to vector<8x256xf32>
    %40 = arith.addf %39, %38 : vector<8x256xf32>
    %41 = arith.divf %39, %40 : vector<8x256xf32>
    %42 = math.tanh %36 : vector<8x256xf32>
    %43 = vector.extract_strided_slice %41 {offsets = [0, 0], sizes = [8, 64], strides = [1, 1]} : vector<8x256xf32> to vector<8x64xf32>
    %44 = vector.extract_strided_slice %41 {offsets = [0, 64], sizes = [8, 64], strides = [1, 1]} : vector<8x256xf32> to vector<8x64xf32>
    %45 = vector.extract_strided_slice %42 {offsets = [0, 128], sizes = [8, 64], strides = [1, 1]} : vector<8x256xf32> to vector<8x64xf32>
    %46 = vector.extract_strided_slice %41 {offsets = [0, 192], sizes = [8, 64], strides = [1, 1]} : vector<8x256xf32> to vector<8x64xf32>
    %47 = arith.mulf %44, %28 : vector<8x64xf32>
    %48 = arith.mulf %43, %45 : vector<8x64xf32>
    %49 = arith.addf %47, %48 : vector<8x64xf32>
    %50 = math.tanh %49 : vector<8x64xf32>
    %51 = arith.mulf %46, %50 : vector<8x64xf32>
    %c2_i32 = arith.constant 2 : i32
    %c8_i32_18 = arith.constant 8 : i32
    %52 = arith.muli %c2_i32, %c8_i32_18 : i32
    %53 = tpu.assume_multiple %52, 8 : i32
    %54 = arith.index_cast %53 : i32 to index
    %c0_19 = arith.constant 0 : index
    %55 = vector.load %arg7[%54, %c0_19] : memref<64x256xf32, #tpu.memory_space<vmem>>, vector<8x256xf32>
    %cst_20 = arith.constant dense<0.000000e+00> : vector<8x256xf32>
    %56 = tpu.matmul %51, %7, %cst_20 {dimension_numbers = #tpu.dot_dimension_numbers<[1], [0], [0], [1], [0, 0, 1, 1], [], []>} : vector<8x64xf32>, vector<64x256xf32>, vector<8x256xf32> -> vector<8x256xf32>
    %57 = arith.addf %55, %56 : vector<8x256xf32>
    %58 = arith.negf %57 : vector<8x256xf32>
    %59 = math.exp %58 : vector<8x256xf32>
    %cst_21 = arith.constant 1.000000e+00 : f32
    %60 = vector.broadcast %cst_21 : f32 to vector<8x256xf32>
    %61 = arith.addf %60, %59 : vector<8x256xf32>
    %62 = arith.divf %60, %61 : vector<8x256xf32>
    %63 = math.tanh %57 : vector<8x256xf32>
    %64 = vector.extract_strided_slice %62 {offsets = [0, 0], sizes = [8, 64], strides = [1, 1]} : vector<8x256xf32> to vector<8x64xf32>
    %65 = vector.extract_strided_slice %62 {offsets = [0, 64], sizes = [8, 64], strides = [1, 1]} : vector<8x256xf32> to vector<8x64xf32>
    %66 = vector.extract_strided_slice %63 {offsets = [0, 128], sizes = [8, 64], strides = [1, 1]} : vector<8x256xf32> to vector<8x64xf32>
    %67 = vector.extract_strided_slice %62 {offsets = [0, 192], sizes = [8, 64], strides = [1, 1]} : vector<8x256xf32> to vector<8x64xf32>
    %68 = arith.mulf %65, %49 : vector<8x64xf32>
    %69 = arith.mulf %64, %66 : vector<8x64xf32>
    %70 = arith.addf %68, %69 : vector<8x64xf32>
    %71 = math.tanh %70 : vector<8x64xf32>
    %72 = arith.mulf %67, %71 : vector<8x64xf32>
    %c3_i32 = arith.constant 3 : i32
    %c8_i32_22 = arith.constant 8 : i32
    %73 = arith.muli %c3_i32, %c8_i32_22 : i32
    %74 = tpu.assume_multiple %73, 8 : i32
    %75 = arith.index_cast %74 : i32 to index
    %c0_23 = arith.constant 0 : index
    %76 = vector.load %arg7[%75, %c0_23] : memref<64x256xf32, #tpu.memory_space<vmem>>, vector<8x256xf32>
    %cst_24 = arith.constant dense<0.000000e+00> : vector<8x256xf32>
    %77 = tpu.matmul %72, %7, %cst_24 {dimension_numbers = #tpu.dot_dimension_numbers<[1], [0], [0], [1], [0, 0, 1, 1], [], []>} : vector<8x64xf32>, vector<64x256xf32>, vector<8x256xf32> -> vector<8x256xf32>
    %78 = arith.addf %76, %77 : vector<8x256xf32>
    %79 = arith.negf %78 : vector<8x256xf32>
    %80 = math.exp %79 : vector<8x256xf32>
    %cst_25 = arith.constant 1.000000e+00 : f32
    %81 = vector.broadcast %cst_25 : f32 to vector<8x256xf32>
    %82 = arith.addf %81, %80 : vector<8x256xf32>
    %83 = arith.divf %81, %82 : vector<8x256xf32>
    %84 = math.tanh %78 : vector<8x256xf32>
    %85 = vector.extract_strided_slice %83 {offsets = [0, 0], sizes = [8, 64], strides = [1, 1]} : vector<8x256xf32> to vector<8x64xf32>
    %86 = vector.extract_strided_slice %83 {offsets = [0, 64], sizes = [8, 64], strides = [1, 1]} : vector<8x256xf32> to vector<8x64xf32>
    %87 = vector.extract_strided_slice %84 {offsets = [0, 128], sizes = [8, 64], strides = [1, 1]} : vector<8x256xf32> to vector<8x64xf32>
    %88 = vector.extract_strided_slice %83 {offsets = [0, 192], sizes = [8, 64], strides = [1, 1]} : vector<8x256xf32> to vector<8x64xf32>
    %89 = arith.mulf %86, %70 : vector<8x64xf32>
    %90 = arith.mulf %85, %87 : vector<8x64xf32>
    %91 = arith.addf %89, %90 : vector<8x64xf32>
    %92 = math.tanh %91 : vector<8x64xf32>
    %93 = arith.mulf %88, %92 : vector<8x64xf32>
    %c4_i32 = arith.constant 4 : i32
    %c8_i32_26 = arith.constant 8 : i32
    %94 = arith.muli %c4_i32, %c8_i32_26 : i32
    %95 = tpu.assume_multiple %94, 8 : i32
    %96 = arith.index_cast %95 : i32 to index
    %c0_27 = arith.constant 0 : index
    %97 = vector.load %arg7[%96, %c0_27] : memref<64x256xf32, #tpu.memory_space<vmem>>, vector<8x256xf32>
    %cst_28 = arith.constant dense<0.000000e+00> : vector<8x256xf32>
    %98 = tpu.matmul %93, %7, %cst_28 {dimension_numbers = #tpu.dot_dimension_numbers<[1], [0], [0], [1], [0, 0, 1, 1], [], []>} : vector<8x64xf32>, vector<64x256xf32>, vector<8x256xf32> -> vector<8x256xf32>
    %99 = arith.addf %97, %98 : vector<8x256xf32>
    %100 = arith.negf %99 : vector<8x256xf32>
    %101 = math.exp %100 : vector<8x256xf32>
    %cst_29 = arith.constant 1.000000e+00 : f32
    %102 = vector.broadcast %cst_29 : f32 to vector<8x256xf32>
    %103 = arith.addf %102, %101 : vector<8x256xf32>
    %104 = arith.divf %102, %103 : vector<8x256xf32>
    %105 = math.tanh %99 : vector<8x256xf32>
    %106 = vector.extract_strided_slice %104 {offsets = [0, 0], sizes = [8, 64], strides = [1, 1]} : vector<8x256xf32> to vector<8x64xf32>
    %107 = vector.extract_strided_slice %104 {offsets = [0, 64], sizes = [8, 64], strides = [1, 1]} : vector<8x256xf32> to vector<8x64xf32>
    %108 = vector.extract_strided_slice %105 {offsets = [0, 128], sizes = [8, 64], strides = [1, 1]} : vector<8x256xf32> to vector<8x64xf32>
    %109 = vector.extract_strided_slice %104 {offsets = [0, 192], sizes = [8, 64], strides = [1, 1]} : vector<8x256xf32> to vector<8x64xf32>
    %110 = arith.mulf %107, %91 : vector<8x64xf32>
    %111 = arith.mulf %106, %108 : vector<8x64xf32>
    %112 = arith.addf %110, %111 : vector<8x64xf32>
    %113 = math.tanh %112 : vector<8x64xf32>
    %114 = arith.mulf %109, %113 : vector<8x64xf32>
    %c5_i32 = arith.constant 5 : i32
    %c8_i32_30 = arith.constant 8 : i32
    %115 = arith.muli %c5_i32, %c8_i32_30 : i32
    %116 = tpu.assume_multiple %115, 8 : i32
    %117 = arith.index_cast %116 : i32 to index
    %c0_31 = arith.constant 0 : index
    %118 = vector.load %arg7[%117, %c0_31] : memref<64x256xf32, #tpu.memory_space<vmem>>, vector<8x256xf32>
    %cst_32 = arith.constant dense<0.000000e+00> : vector<8x256xf32>
    %119 = tpu.matmul %114, %7, %cst_32 {dimension_numbers = #tpu.dot_dimension_numbers<[1], [0], [0], [1], [0, 0, 1, 1], [], []>} : vector<8x64xf32>, vector<64x256xf32>, vector<8x256xf32> -> vector<8x256xf32>
    %120 = arith.addf %118, %119 : vector<8x256xf32>
    %121 = arith.negf %120 : vector<8x256xf32>
    %122 = math.exp %121 : vector<8x256xf32>
    %cst_33 = arith.constant 1.000000e+00 : f32
    %123 = vector.broadcast %cst_33 : f32 to vector<8x256xf32>
    %124 = arith.addf %123, %122 : vector<8x256xf32>
    %125 = arith.divf %123, %124 : vector<8x256xf32>
    %126 = math.tanh %120 : vector<8x256xf32>
    %127 = vector.extract_strided_slice %125 {offsets = [0, 0], sizes = [8, 64], strides = [1, 1]} : vector<8x256xf32> to vector<8x64xf32>
    %128 = vector.extract_strided_slice %125 {offsets = [0, 64], sizes = [8, 64], strides = [1, 1]} : vector<8x256xf32> to vector<8x64xf32>
    %129 = vector.extract_strided_slice %126 {offsets = [0, 128], sizes = [8, 64], strides = [1, 1]} : vector<8x256xf32> to vector<8x64xf32>
    %130 = vector.extract_strided_slice %125 {offsets = [0, 192], sizes = [8, 64], strides = [1, 1]} : vector<8x256xf32> to vector<8x64xf32>
    %131 = arith.mulf %128, %112 : vector<8x64xf32>
    %132 = arith.mulf %127, %129 : vector<8x64xf32>
    %133 = arith.addf %131, %132 : vector<8x64xf32>
    %134 = math.tanh %133 : vector<8x64xf32>
    %135 = arith.mulf %130, %134 : vector<8x64xf32>
    %c6_i32 = arith.constant 6 : i32
    %c8_i32_34 = arith.constant 8 : i32
    %136 = arith.muli %c6_i32, %c8_i32_34 : i32
    %137 = tpu.assume_multiple %136, 8 : i32
    %138 = arith.index_cast %137 : i32 to index
    %c0_35 = arith.constant 0 : index
    %139 = vector.load %arg7[%138, %c0_35] : memref<64x256xf32, #tpu.memory_space<vmem>>, vector<8x256xf32>
    %cst_36 = arith.constant dense<0.000000e+00> : vector<8x256xf32>
    %140 = tpu.matmul %135, %7, %cst_36 {dimension_numbers = #tpu.dot_dimension_numbers<[1], [0], [0], [1], [0, 0, 1, 1], [], []>} : vector<8x64xf32>, vector<64x256xf32>, vector<8x256xf32> -> vector<8x256xf32>
    %141 = arith.addf %139, %140 : vector<8x256xf32>
    %142 = arith.negf %141 : vector<8x256xf32>
    %143 = math.exp %142 : vector<8x256xf32>
    %cst_37 = arith.constant 1.000000e+00 : f32
    %144 = vector.broadcast %cst_37 : f32 to vector<8x256xf32>
    %145 = arith.addf %144, %143 : vector<8x256xf32>
    %146 = arith.divf %144, %145 : vector<8x256xf32>
    %147 = math.tanh %141 : vector<8x256xf32>
    %148 = vector.extract_strided_slice %146 {offsets = [0, 0], sizes = [8, 64], strides = [1, 1]} : vector<8x256xf32> to vector<8x64xf32>
    %149 = vector.extract_strided_slice %146 {offsets = [0, 64], sizes = [8, 64], strides = [1, 1]} : vector<8x256xf32> to vector<8x64xf32>
    %150 = vector.extract_strided_slice %147 {offsets = [0, 128], sizes = [8, 64], strides = [1, 1]} : vector<8x256xf32> to vector<8x64xf32>
    %151 = vector.extract_strided_slice %146 {offsets = [0, 192], sizes = [8, 64], strides = [1, 1]} : vector<8x256xf32> to vector<8x64xf32>
    %152 = arith.mulf %149, %133 : vector<8x64xf32>
    %153 = arith.mulf %148, %150 : vector<8x64xf32>
    %154 = arith.addf %152, %153 : vector<8x64xf32>
    %155 = math.tanh %154 : vector<8x64xf32>
    %156 = arith.mulf %151, %155 : vector<8x64xf32>
    %c7_i32 = arith.constant 7 : i32
    %c8_i32_38 = arith.constant 8 : i32
    %157 = arith.muli %c7_i32, %c8_i32_38 : i32
    %158 = tpu.assume_multiple %157, 8 : i32
    %159 = arith.index_cast %158 : i32 to index
    %c0_39 = arith.constant 0 : index
    %160 = vector.load %arg7[%159, %c0_39] : memref<64x256xf32, #tpu.memory_space<vmem>>, vector<8x256xf32>
    %cst_40 = arith.constant dense<0.000000e+00> : vector<8x256xf32>
    %161 = tpu.matmul %156, %7, %cst_40 {dimension_numbers = #tpu.dot_dimension_numbers<[1], [0], [0], [1], [0, 0, 1, 1], [], []>} : vector<8x64xf32>, vector<64x256xf32>, vector<8x256xf32> -> vector<8x256xf32>
    %162 = arith.addf %160, %161 : vector<8x256xf32>
    %163 = arith.negf %162 : vector<8x256xf32>
    %164 = math.exp %163 : vector<8x256xf32>
    %cst_41 = arith.constant 1.000000e+00 : f32
    %165 = vector.broadcast %cst_41 : f32 to vector<8x256xf32>
    %166 = arith.addf %165, %164 : vector<8x256xf32>
    %167 = arith.divf %165, %166 : vector<8x256xf32>
    %168 = math.tanh %162 : vector<8x256xf32>
    %169 = vector.extract_strided_slice %167 {offsets = [0, 0], sizes = [8, 64], strides = [1, 1]} : vector<8x256xf32> to vector<8x64xf32>
    %170 = vector.extract_strided_slice %167 {offsets = [0, 64], sizes = [8, 64], strides = [1, 1]} : vector<8x256xf32> to vector<8x64xf32>
    %171 = vector.extract_strided_slice %168 {offsets = [0, 128], sizes = [8, 64], strides = [1, 1]} : vector<8x256xf32> to vector<8x64xf32>
    %172 = vector.extract_strided_slice %167 {offsets = [0, 192], sizes = [8, 64], strides = [1, 1]} : vector<8x256xf32> to vector<8x64xf32>
    %173 = arith.mulf %170, %154 : vector<8x64xf32>
    %174 = arith.mulf %169, %171 : vector<8x64xf32>
    %175 = arith.addf %173, %174 : vector<8x64xf32>
    %176 = math.tanh %175 : vector<8x64xf32>
    %177 = arith.mulf %172, %176 : vector<8x64xf32>
    %c8_i32_42 = arith.constant 8 : i32
    %c0_43 = arith.constant 0 : index
    %c0_44 = arith.constant 0 : index
    %178 = vector.load %arg4[%c0_43, %c0_44] : memref<64x128xf32, #tpu.memory_space<vmem>>, vector<64x128xf32>
    %cst_45 = arith.constant dense<0.000000e+00> : vector<8x128xf32>
    %179 = tpu.matmul %177, %178, %cst_45 {dimension_numbers = #tpu.dot_dimension_numbers<[1], [0], [0], [1], [0, 0, 1, 1], [], []>} : vector<8x64xf32>, vector<64x128xf32>, vector<8x128xf32> -> vector<8x128xf32>
    %c0_46 = arith.constant 0 : index
    %c0_47 = arith.constant 0 : index
    %180 = vector.load %arg5[%c0_46, %c0_47] : memref<1x128xf32, #tpu.memory_space<vmem>>, vector<1x128xf32>
    %181 = vector.broadcast %180 : vector<1x128xf32> to vector<8x128xf32>
    %182 = arith.addf %179, %181 : vector<8x128xf32>
    %cst_48 = arith.constant dense<0xFF800000> : vector<8xf32>
    %183 = vector.multi_reduction <maximumf>, %182, %cst_48 [1] : vector<8x128xf32> to vector<8xf32>
    %184 = vector.shape_cast %183 : vector<8xf32> to vector<8x1xf32>
    %185 = vector.broadcast %184 : vector<8x1xf32> to vector<8x128xf32>
    %186 = arith.subf %182, %185 : vector<8x128xf32>
    %187 = math.exp %186 : vector<8x128xf32>
    %cst_49 = arith.constant dense<0.000000e+00> : vector<8xf32>
    %188 = vector.multi_reduction <add>, %187, %cst_49 [1] : vector<8x128xf32> to vector<8xf32>
    %189 = vector.shape_cast %188 : vector<8xf32> to vector<8x1xf32>
    %190 = math.log %189 : vector<8x1xf32>
    %191 = arith.addf %184, %190 : vector<8x1xf32>
    %192 = vector.broadcast %191 : vector<8x1xf32> to vector<8x128xf32>
    %193 = arith.subf %182, %192 : vector<8x128xf32>
    %c0_50 = arith.constant 0 : index
    %c0_51 = arith.constant 0 : index
    %194 = vector.load %arg6[%c0_50, %c0_51] : memref<8x128xf32, #tpu.memory_space<vmem>>, vector<8x128xf32>
    tpu.vector_store %arg6[%c0_50, %c0_51], %193 {strides = array<i32>} : memref<8x128xf32, #tpu.memory_space<vmem>>, vector<8x128xf32>,
    return
  }
}

</mosaic_0001>

<llo_original>
// kernel: lstm_model_forward.3
$region0: #{lstm_model_forward.3}
  #allocation0 [shape = 'u32[]', space=smem, size = 0x4, offset = 0x4, fixed_abs, tag = 'smem constant byte address 0x4 - core index']
  #allocation1 [shape = 'u32[144,128]{1,0:T(1,128)}', space=vmem, size = 0x12000, scoped, tag = 'internal scratch']
  %s0 = inlined_call_operand.vmem [shape: f32[8,128], index: 0, kind: input, shape index: {}]
  %s1 = inlined_call_operand.vmem [shape: bf16[128,256], index: 1, kind: input, shape index: {}]
  %s2 = inlined_call_operand.vmem [shape: f32[1,256], index: 2, kind: input, shape index: {}]
  %s3 = inlined_call_operand.hbm [shape: f32[8,256], index: 3, kind: output, shape index: {}]
  %s4 = sld [smem:[#allocation0]]
  $region22: #{lstm_model_forward.3} parent=0
    _
  %s6 = ssub.s32 1, %s4
  %s7 = scalar_select 0, %s6, %s4
  $region1: #{lstm_model_forward.3} parent=0
    #allocation2 [shape = 'u8[8192]{0}', space=vmem, size = 0x2000, scoped, tag = 'output window, operand 0, single buffered']
    #allocation3 [shape = 's32[1]{0}', space=sflag, size = 0x4, scoped, tag = 'scoped memory for lstm_model_forward.3']
    %8 = vsyncpa [#allocation3], 0
    // Predicated region
    $region2: #{lstm_model_forward.3} parent=1 // pred_check
      _
    $region3: #{lstm_model_forward.3} parent=1 // pred_check_branch
      %10 = sbr.rel (0) target = $region5
    $region4: #{lstm_model_forward.3} parent=1 // pred_region
      _
    $region5: #{lstm_model_forward.3} parent=1 // pred_fallthru
      _
    // Predicated region
    $region6: #{lstm_model_forward.3} parent=1 // pred_check
      _
    $region7: #{lstm_model_forward.3} parent=1 // pred_check_branch
      %12 = sbr.rel (0) target = $region9
    $region8: #{lstm_model_forward.3} parent=1 // pred_region
      _
    $region9: #{lstm_model_forward.3} parent=1 // pred_fallthru
      _
    // Predicated region
    $region10: #{lstm_model_forward.3} parent=1 // pred_check
      _
    $region11: #{lstm_model_forward.3} parent=1 // pred_check_branch
      %14 = sbr.rel (0) target = $region13
    $region12: #{lstm_model_forward.3} parent=1 // pred_region
      _
    $region13: #{lstm_model_forward.3} parent=1 // pred_fallthru
      _
    %v16 = vld [vmem:[%s0] sm:$0xff]
    %v17 = vpack.c.bf16 %v16, %v16
    %v18 = vld [vmem:[%s1] sm:$0xff]
    %v19 = vld [vmem:[%s1 + $0x8] sm:$0xff]
    %v20 = vld [vmem:[%s1 + $0x10] sm:$0xff]
    %v21 = vld [vmem:[%s1 + $0x18] sm:$0xff]
    %v22 = vld [vmem:[%s1 + $0x20] sm:$0xff]
    %v23 = vld [vmem:[%s1 + $0x28] sm:$0xff]
    %v24 = vld [vmem:[%s1 + $0x30] sm:$0xff]
    %v25 = vld [vmem:[%s1 + $0x38] sm:$0xff]
    %v26 = vld [vmem:[%s1 + $0x40] sm:$0xff]
    %v27 = vld [vmem:[%s1 + $0x48] sm:$0xff]
    %v28 = vld [vmem:[%s1 + $0x50] sm:$0xff]
    %v29 = vld [vmem:[%s1 + $0x58] sm:$0xff]
    %v30 = vld [vmem:[%s1 + $0x60] sm:$0xff]
    %v31 = vld [vmem:[%s1 + $0x68] sm:$0xff]
    %v32 = vld [vmem:[%s1 + $0x70] sm:$0xff]
    %v33 = vld [vmem:[%s1 + $0x78] sm:$0xff]
    %v34 = vld [vmem:[%s2] sm:$0x3]
    %v36 = vlaneseq
    %v37 = vshrl.u32 %v36, 7
    %v38 = vsub.s32 0, %v37
    %v39 = vrot.slane %v34, %v38
    %v40 = vlaneseq
    %v41 = vshrl.u32 %v40, 7
    %v42 = vsub.s32 1, %v41
    %v43 = vrot.slane %v34, %v42
    %v62 = vunpack.c.l.b16 %v18
    %v63 = vunpack.c.h.b16 %v18
    %v64 = vunpack.c.l.b16 %v19
    %v65 = vunpack.c.h.b16 %v19
    %v66 = vunpack.c.l.b16 %v20
    %v67 = vunpack.c.h.b16 %v20
    %v68 = vunpack.c.l.b16 %v21
    %v69 = vunpack.c.h.b16 %v21
    %v70 = vunpack.c.l.b16 %v22
    %v71 = vunpack.c.h.b16 %v22
    %v72 = vunpack.c.l.b16 %v23
    %v73 = vunpack.c.h.b16 %v23
    %v74 = vunpack.c.l.b16 %v24
    %v75 = vunpack.c.h.b16 %v24
    %v76 = vunpack.c.l.b16 %v25
    %v77 = vunpack.c.h.b16 %v25
    %v78 = vunpack.c.l.b16 %v26
    %v79 = vunpack.c.h.b16 %v26
    %v80 = vunpack.c.l.b16 %v27
    %v81 = vunpack.c.h.b16 %v27
    %v82 = vunpack.c.l.b16 %v28
    %v83 = vunpack.c.h.b16 %v28
    %v84 = vunpack.c.l.b16 %v29
    %v85 = vunpack.c.h.b16 %v29
    %v86 = vunpack.c.l.b16 %v30
    %v87 = vunpack.c.h.b16 %v30
    %v88 = vunpack.c.l.b16 %v31
    %v89 = vunpack.c.h.b16 %v31
    %v90 = vunpack.c.l.b16 %v32
    %v91 = vunpack.c.h.b16 %v32
    %v92 = vunpack.c.l.b16 %v33
    %v93 = vunpack.c.h.b16 %v33
    %v94 = vpack.c.b16 %v64, %v62
    %v95 = vpack.c.b16 %v65, %v63
    %v96 = vpack.c.b16 %v68, %v66
    %v97 = vpack.c.b16 %v69, %v67
    %v98 = vpack.c.b16 %v72, %v70
    %v99 = vpack.c.b16 %v73, %v71
    %v100 = vpack.c.b16 %v76, %v74
    %v101 = vpack.c.b16 %v77, %v75
    %v102 = vpack.c.b16 %v80, %v78
    %v103 = vpack.c.b16 %v81, %v79
    %v104 = vpack.c.b16 %v84, %v82
    %v105 = vpack.c.b16 %v85, %v83
    %v106 = vpack.c.b16 %v88, %v86
    %v107 = vpack.c.b16 %v89, %v87
    %v108 = vpack.c.b16 %v92, %v90
    %v109 = vpack.c.b16 %v93, %v91
    %126 = vmatprep.subr.bf16.mxu0 %v95
    %127 = vmatpush1.bf16.msra.mxu0 %v94
    %128 = vmatprep.subr.bf16.mxu0 %v97
    %129 = vmatpush1.bf16.msra.mxu0 %v96
    %130 = vmatprep.subr.bf16.mxu0 %v99
    %131 = vmatpush1.bf16.msra.mxu0 %v98
    %132 = vmatprep.subr.bf16.mxu0 %v101
    %133 = vmatpush1.bf16.msra.mxu0 %v100
    %134 = vmatprep.subr.bf16.mxu0 %v103
    %135 = vmatpush1.bf16.msra.mxu0 %v102
    %136 = vmatprep.subr.bf16.mxu0 %v105
    %137 = vmatpush1.bf16.msra.mxu0 %v104
    %138 = vmatprep.subr.bf16.mxu0 %v107
    %139 = vmatpush1.bf16.msra.mxu0 %v106
    %140 = vmatprep.subr.bf16.mxu0 %v109
    %141 = vmatpush1.bf16.msra.mxu0 %v108
    %142 = vmatprep.subr.bf16.mxu0 0
    %143 = vmatpush1.bf16.msra.mxu0 0
    %144 = vmatprep.subr.bf16.mxu0 0
    %145 = vmatpush1.bf16.msra.mxu0 0
    %146 = vmatprep.subr.bf16.mxu0 0
    %147 = vmatpush1.bf16.msra.mxu0 0
    %148 = vmatprep.subr.bf16.mxu0 0
    %149 = vmatpush1.bf16.msra.mxu0 0
    %150 = vmatprep.subr.bf16.mxu0 0
    %151 = vmatpush1.bf16.msra.mxu0 0
    %152 = vmatprep.subr.bf16.mxu0 0
    %153 = vmatpush1.bf16.msra.mxu0 0
    %154 = vmatprep.subr.bf16.mxu0 0
    %155 = vmatpush1.bf16.msra.mxu0 0
    %156 = vmatprep.subr.bf16.mxu0 0
    %157 = vmatpush1.bf16.msra.mxu0 0
    %158 = vmatprep.mubr.bf16.mxu0 0
    %159 = vmatmul.mubr.bf16.gmra.mrb[0].mxu0 %v17
    %v160 = vpop.f32.mrb[0].mxu0
    %v161 = vadd.f32 %v39, %v160
    %v162 = vpop.f32.mrb[0].mxu0
    %v163 = vadd.f32 %v43, %v162
    %v164 = vpop.f32.mrb[0].mxu0
    %v165 = vpop.f32.mrb[0].mxu0
    %166 = vdwg.mxu0
    %v167 = vxor.u32 %v161, 2147483648
    %v168 = vxor.u32 %v163, 2147483648
    %v169 = vmul.f32 %v167, 1.442695
    %v170 = vpow.pop %v169
    %v171 = vmul.f32 %v168, 1.442695
    %v172 = vpow.pop %v171
    %v173 = vadd.f32 %v170, 1.0
    %v174 = vadd.f32 %v172, 1.0
    %v175 = vrcp.pop %v173
    %v176 = vmul.f32 1.0, %v175
    %v177 = vrcp.pop %v174
    %v178 = vmul.f32 1.0, %v177
    %179 = vst [vmem:[#allocation2] sm:$0xff] %v176
    %180 = vst [vmem:[#allocation2 + $0x8] sm:$0xff] %v178
    // Predicated region
    $region14: #{lstm_model_forward.3} parent=1 // pred_check
      _
    $region15: #{lstm_model_forward.3} parent=1 // pred_check_branch
      %182 = sbr.rel (0) target = $region17
    $region16: #{lstm_model_forward.3} parent=1 // pred_region
      %s184 = ssub.s32 256, 256
      %185 = vsyncadd [#allocation3], %s184
      %s187 = sshll.u32 [#allocation2], 4
      %s188 = int_to_ptr.vmem [resolvable:$true] %s187
      %190 = dma.vmem_to_hbm [thread:$0]  %s188, 256, %s3, [#allocation3]
    $region17: #{lstm_model_forward.3} parent=1 // pred_fallthru
      _
    // Predicated region
    $region18: #{lstm_model_forward.3} parent=1 // pred_check
      _
    $region19: #{lstm_model_forward.3} parent=1 // pred_check_branch
      %192 = sbr.rel (0) target = $region21
    $region20: #{lstm_model_forward.3} parent=1 // pred_region
      %193 = dma.done [#allocation3], 256
    $region21: #{lstm_model_forward.3} parent=1 // pred_fallthru
      _
    %194 = vsyncpa [#allocation3], 1

// kernel: lstm_model_forward.2
$region0: #{lstm_model_forward.2}
  #allocation0 [shape = 'u32[]', space=smem, size = 0x4, offset = 0x4, fixed_abs, tag = 'smem constant byte address 0x4 - core index']
  #allocation1 [shape = 'u32[144,128]{1,0:T(1,128)}', space=vmem, size = 0x12000, scoped, tag = 'internal scratch']
  #allocation2 [shape = 'f32[64,256]{1,0:T(8,128)}', space=vmem, size = 0x10000, scoped, tag = 'scratch operand']
  %s0 = inlined_call_operand.vmem [shape: f32[64,32], index: 0, kind: input, shape index: {}]
  %s1 = inlined_call_operand.vmem [shape: f32[32,256], index: 1, kind: input, shape index: {}]
  %s2 = inlined_call_operand.vmem [shape: f32[64,256], index: 2, kind: input, shape index: {}]
  %s3 = inlined_call_operand.vmem [shape: f32[1,256], index: 3, kind: input, shape index: {}]
  %s4 = inlined_call_operand.vmem [shape: f32[64,128], index: 4, kind: input, shape index: {}]
  %s5 = inlined_call_operand.vmem [shape: f32[1,128], index: 5, kind: input, shape index: {}]
  %s6 = inlined_call_operand.vmem [shape: f32[8,128], index: 6, kind: output, shape index: {}]
  %s7 = sld [smem:[#allocation0]]
  $region34: #{lstm_model_forward.2} parent=0
    _
  %s9 = ssub.s32 1, %s7
  %s10 = scalar_select 0, %s9, %s7
  // Predicated region
  $region2: #{lstm_model_forward.2} parent=0 // pred_check
    _
  $region3: #{lstm_model_forward.2} parent=0 // pred_check_branch
    %12 = sbr.rel (0) target = $region5
  $region4: #{lstm_model_forward.2} parent=0 // pred_region
    _
  $region5: #{lstm_model_forward.2} parent=0 // pred_fallthru
    _
  // Predicated region
  $region6: #{lstm_model_forward.2} parent=0 // pred_check
    _
  $region7: #{lstm_model_forward.2} parent=0 // pred_check_branch
    %14 = sbr.rel (0) target = $region9
  $region8: #{lstm_model_forward.2} parent=0 // pred_region
    _
  $region9: #{lstm_model_forward.2} parent=0 // pred_fallthru
    _
  // Predicated region
  $region10: #{lstm_model_forward.2} parent=0 // pred_check
    _
  $region11: #{lstm_model_forward.2} parent=0 // pred_check_branch
    %16 = sbr.rel (0) target = $region13
  $region12: #{lstm_model_forward.2} parent=0 // pred_region
    _
  $region13: #{lstm_model_forward.2} parent=0 // pred_fallthru
    _
  // Predicated region
  $region14: #{lstm_model_forward.2} parent=0 // pred_check
    _
  $region15: #{lstm_model_forward.2} parent=0 // pred_check_branch
    %18 = sbr.rel (0) target = $region17
  $region16: #{lstm_model_forward.2} parent=0 // pred_region
    _
  $region17: #{lstm_model_forward.2} parent=0 // pred_fallthru
    _
  // Predicated region
  $region18: #{lstm_model_forward.2} parent=0 // pred_check
    _
  $region19: #{lstm_model_forward.2} parent=0 // pred_check_branch
    %20 = sbr.rel (0) target = $region21
  $region20: #{lstm_model_forward.2} parent=0 // pred_region
    _
  $region21: #{lstm_model_forward.2} parent=0 // pred_fallthru
    _
  // Predicated region
  $region22: #{lstm_model_forward.2} parent=0 // pred_check
    _
  $region23: #{lstm_model_forward.2} parent=0 // pred_check_branch
    %22 = sbr.rel (0) target = $region25
  $region24: #{lstm_model_forward.2} parent=0 // pred_region
    _
  $region25: #{lstm_model_forward.2} parent=0 // pred_fallthru
    _
  %v23 = vld [vmem:[%s0] sm:$0xff]
  %v24 = vld [vmem:[%s0 + $0x8] sm:$0xff]
  %v25 = vld [vmem:[%s0 + $0x10] sm:$0xff]
  %v26 = vld [vmem:[%s0 + $0x18] sm:$0xff]
  %v27 = vld [vmem:[%s0 + $0x20] sm:$0xff]
  %v28 = vld [vmem:[%s0 + $0x28] sm:$0xff]
  %v29 = vld [vmem:[%s0 + $0x30] sm:$0xff]
  %v30 = vld [vmem:[%s0 + $0x38] sm:$0xff]
  %v31 = vld [vmem:[%s1] sm:$0xff]
  %v32 = vld [vmem:[%s1 + $0x8] sm:$0xff]
  %v33 = vld [vmem:[%s1 + $0x10] sm:$0xff]
  %v34 = vld [vmem:[%s1 + $0x18] sm:$0xff]
  %v35 = vld [vmem:[%s1 + $0x20] sm:$0xff]
  %v36 = vld [vmem:[%s1 + $0x28] sm:$0xff]
  %v37 = vld [vmem:[%s1 + $0x30] sm:$0xff]
  %v38 = vld [vmem:[%s1 + $0x38] sm:$0xff]
  %v39 = vld [vmem:[%s3] sm:$0x3]
  %v41 = vlaneseq
  %v42 = vshrl.u32 %v41, 7
  %v43 = vsub.s32 0, %v42
  %v44 = vrot.slane %v39, %v43
  %v45 = vlaneseq
  %v46 = vshrl.u32 %v45, 7
  %v47 = vsub.s32 1, %v46
  %v48 = vrot.slane %v39, %v47
  %vm51 = vcmask 261120
  %v53 = vsel %vm51, %v23, 0
  %v56 = vsel %vm51, %v24, 0
  %v59 = vsel %vm51, %v25, 0
  %v62 = vsel %vm51, %v26, 0
  %v65 = vsel %vm51, %v27, 0
  %v68 = vsel %vm51, %v28, 0
  %v71 = vsel %vm51, %v29, 0
  %v74 = vsel %vm51, %v30, 0
  %76 = vmatprep.subr.mxu0 %v32
  %77 = vmatpush1.msra.mxu0 %v31
  %78 = vmatprep.subr.mxu0 %v34
  %79 = vmatpush1.msra.mxu0 %v33
  %80 = vmatprep.subr.mxu0 %v36
  %81 = vmatpush1.msra.mxu0 %v35
  %82 = vmatprep.subr.mxu0 %v38
  %83 = vmatpush1.msra.mxu0 %v37
  %84 = vmatprep.subr.mxu0 0.0
  %85 = vmatpush1.msra.mxu0 0.0
  %86 = vmatprep.subr.mxu0 0.0
  %87 = vmatpush1.msra.mxu0 0.0
  %88 = vmatprep.subr.mxu0 0.0
  %89 = vmatpush1.msra.mxu0 0.0
  %90 = vmatprep.subr.mxu0 0.0
  %91 = vmatpush1.msra.mxu0 0.0
  %92 = vmatprep.subr.mxu0 0.0
  %93 = vmatpush1.msra.mxu0 0.0
  %94 = vmatprep.subr.mxu0 0.0
  %95 = vmatpush1.msra.mxu0 0.0
  %96 = vmatprep.subr.mxu0 0.0
  %97 = vmatpush1.msra.mxu0 0.0
  %98 = vmatprep.subr.mxu0 0.0
  %99 = vmatpush1.msra.mxu0 0.0
  %100 = vmatprep.subr.mxu0 0.0
  %101 = vmatpush1.msra.mxu0 0.0
  %102 = vmatprep.subr.mxu0 0.0
  %103 = vmatpush1.msra.mxu0 0.0
  %104 = vmatprep.subr.mxu0 0.0
  %105 = vmatpush1.msra.mxu0 0.0
  %106 = vmatprep.subr.mxu0 0.0
  %107 = vmatpush1.msra.mxu0 0.0
  %108 = vmatprep.subr.mxu0 0.0
  %109 = vmatpush1.msra.mxu0 0.0
  %110 = vmatprep.subr.mxu0 0.0
  %111 = vmatpush1.msra.mxu0 0.0
  %112 = vmatprep.subr.mxu0 0.0
  %113 = vmatpush1.msra.mxu0 0.0
  %114 = vmatprep.subr.mxu0 0.0
  %115 = vmatpush1.msra.mxu0 0.0
  %116 = vmatprep.subr.mxu0 0.0
  %117 = vmatpush1.msra.mxu0 0.0
  %118 = vmatprep.subr.mxu0 0.0
  %119 = vmatpush1.msra.mxu0 0.0
  %120 = vmatprep.subr.mxu0 0.0
  %121 = vmatpush1.msra.mxu0 0.0
  %122 = vmatprep.subr.mxu0 0.0
  %123 = vmatpush1.msra.mxu0 0.0
  %124 = vmatprep.subr.mxu0 0.0
  %125 = vmatpush1.msra.mxu0 0.0
  %126 = vmatprep.subr.mxu0 0.0
  %127 = vmatpush1.msra.mxu0 0.0
  %128 = vmatprep.subr.mxu0 0.0
  %129 = vmatpush1.msra.mxu0 0.0
  %130 = vmatprep.subr.mxu0 0.0
  %131 = vmatpush1.msra.mxu0 0.0
  %132 = vmatprep.subr.mxu0 0.0
  %133 = vmatpush1.msra.mxu0 0.0
  %134 = vmatprep.subr.mxu0 0.0
  %135 = vmatpush1.msra.mxu0 0.0
  %136 = vmatprep.subr.mxu0 0.0
  %137 = vmatpush1.msra.mxu0 0.0
  %138 = vmatprep.subr.mxu0 0.0
  %139 = vmatpush1.msra.mxu0 0.0
  %140 = vmatprep.mubr.f32.mxu0 0.0
  %141 = vmatmul.mubr.f32.gmra.mrb[0].mxu0 %v53
  %v142 = vpop.f32.mrb[0].mxu0
  %v143 = vadd.f32 %v44, %v142
  %v144 = vpop.f32.mrb[0].mxu0
  %v145 = vadd.f32 %v48, %v144
  %146 = vmatprep.mubr.f32.mxu0 0.0
  %147 = vmatmul.mubr.f32.gmra.mrb[0].mxu0 %v56
  %v148 = vpop.f32.mrb[0].mxu0
  %v149 = vadd.f32 %v44, %v148
  %v150 = vpop.f32.mrb[0].mxu0
  %v151 = vadd.f32 %v48, %v150
  %152 = vmatprep.mubr.f32.mxu0 0.0
  %153 = vmatmul.mubr.f32.gmra.mrb[0].mxu0 %v59
  %v154 = vpop.f32.mrb[0].mxu0
  %v155 = vadd.f32 %v44, %v154
  %v156 = vpop.f32.mrb[0].mxu0
  %v157 = vadd.f32 %v48, %v156
  %158 = vmatprep.mubr.f32.mxu0 0.0
  %159 = vmatmul.mubr.f32.gmra.mrb[0].mxu0 %v62
  %v160 = vpop.f32.mrb[0].mxu0
  %v161 = vadd.f32 %v44, %v160
  %v162 = vpop.f32.mrb[0].mxu0
  %v163 = vadd.f32 %v48, %v162
  %164 = vmatprep.mubr.f32.mxu0 0.0
  %165 = vmatmul.mubr.f32.gmra.mrb[0].mxu0 %v65
  %v166 = vpop.f32.mrb[0].mxu0
  %v167 = vadd.f32 %v44, %v166
  %v168 = vpop.f32.mrb[0].mxu0
  %v169 = vadd.f32 %v48, %v168
  %170 = vmatprep.mubr.f32.mxu0 0.0
  %171 = vmatmul.mubr.f32.gmra.mrb[0].mxu0 %v68
  %v172 = vpop.f32.mrb[0].mxu0
  %v173 = vadd.f32 %v44, %v172
  %v174 = vpop.f32.mrb[0].mxu0
  %v175 = vadd.f32 %v48, %v174
  %176 = vmatprep.mubr.f32.mxu0 0.0
  %177 = vmatmul.mubr.f32.gmra.mrb[0].mxu0 %v71
  %v178 = vpop.f32.mrb[0].mxu0
  %v179 = vadd.f32 %v44, %v178
  %v180 = vpop.f32.mrb[0].mxu0
  %v181 = vadd.f32 %v48, %v180
  %182 = vmatprep.mubr.f32.mxu0 0.0
  %183 = vmatmul.mubr.f32.gmra.mrb[0].mxu0 %v74
  %v184 = vpop.f32.mrb[0].mxu0
  %v185 = vadd.f32 %v44, %v184
  %v186 = vpop.f32.mrb[0].mxu0
  %v187 = vadd.f32 %v48, %v186
  %188 = vdwg.mxu0
  %189 = vst [vmem:[#allocation2] sm:$0xff] %v143
  %190 = vst [vmem:[#allocation2 + $0x8] sm:$0xff] %v145
  %191 = vst [vmem:[#allocation2 + $0x10] sm:$0xff] %v149
  %192 = vst [vmem:[#allocation2 + $0x18] sm:$0xff] %v151
  %193 = vst [vmem:[#allocation2 + $0x20] sm:$0xff] %v155
  %194 = vst [vmem:[#allocation2 + $0x28] sm:$0xff] %v157
  %195 = vst [vmem:[#allocation2 + $0x30] sm:$0xff] %v161
  %196 = vst [vmem:[#allocation2 + $0x38] sm:$0xff] %v163
  %197 = vst [vmem:[#allocation2 + $0x40] sm:$0xff] %v167
  %198 = vst [vmem:[#allocation2 + $0x48] sm:$0xff] %v169
  %199 = vst [vmem:[#allocation2 + $0x50] sm:$0xff] %v173
  %200 = vst [vmem:[#allocation2 + $0x58] sm:$0xff] %v175
  %201 = vst [vmem:[#allocation2 + $0x60] sm:$0xff] %v179
  %202 = vst [vmem:[#allocation2 + $0x68] sm:$0xff] %v181
  %203 = vst [vmem:[#allocation2 + $0x70] sm:$0xff] %v185
  %204 = vst [vmem:[#allocation2 + $0x78] sm:$0xff] %v187
  %v205 = vld [vmem:[%s2] sm:$0xff]
  %v206 = vld [vmem:[%s2 + $0x8] sm:$0xff]
  %v207 = vld [vmem:[%s2 + $0x10] sm:$0xff]
  %v208 = vld [vmem:[%s2 + $0x18] sm:$0xff]
  %v209 = vld [vmem:[%s2 + $0x20] sm:$0xff]
  %v210 = vld [vmem:[%s2 + $0x28] sm:$0xff]
  %v211 = vld [vmem:[%s2 + $0x30] sm:$0xff]
  %v212 = vld [vmem:[%s2 + $0x38] sm:$0xff]
  %v213 = vld [vmem:[%s2 + $0x40] sm:$0xff]
  %v214 = vld [vmem:[%s2 + $0x48] sm:$0xff]
  %v215 = vld [vmem:[%s2 + $0x50] sm:$0xff]
  %v216 = vld [vmem:[%s2 + $0x58] sm:$0xff]
  %v217 = vld [vmem:[%s2 + $0x60] sm:$0xff]
  %v218 = vld [vmem:[%s2 + $0x68] sm:$0xff]
  %v219 = vld [vmem:[%s2 + $0x70] sm:$0xff]
  %v220 = vld [vmem:[%s2 + $0x78] sm:$0xff]
  %s221 = smul.u32 0, 2
  %s222 = smul.addr %s221, 8
  %s223 = scalar_lea.vmem [#allocation2], %s222
  %v224 = vld [vmem:[%s223] sm:$0xff]
  %v225 = vld [vmem:[%s223 + $0x8] sm:$0xff]
  %vm226 = vcmask 523264
  %v228 = vsel %vm226, 0.0, 0
  %230 = vmatprep.subr.mxu0 %v206
  %231 = vmatpush1.msra.mxu0 %v205
  %232 = vmatprep.subr.mxu0 %v208
  %233 = vmatpush1.msra.mxu0 %v207
  %234 = vmatprep.subr.mxu0 %v210
  %235 = vmatpush1.msra.mxu0 %v209
  %236 = vmatprep.subr.mxu0 %v212
  %237 = vmatpush1.msra.mxu0 %v211
  %238 = vmatprep.subr.mxu0 %v214
  %239 = vmatpush1.msra.mxu0 %v213
  %240 = vmatprep.subr.mxu0 %v216
  %241 = vmatpush1.msra.mxu0 %v215
  %242 = vmatprep.subr.mxu0 %v218
  %243 = vmatpush1.msra.mxu0 %v217
  %244 = vmatprep.subr.mxu0 %v220
  %245 = vmatpush1.msra.mxu0 %v219
  %246 = vmatprep.subr.mxu0 0.0
  %247 = vmatpush1.msra.mxu0 0.0
  %248 = vmatprep.subr.mxu0 0.0
  %249 = vmatpush1.msra.mxu0 0.0
  %250 = vmatprep.subr.mxu0 0.0
  %251 = vmatpush1.msra.mxu0 0.0
  %252 = vmatprep.subr.mxu0 0.0
  %253 = vmatpush1.msra.mxu0 0.0
  %254 = vmatprep.subr.mxu0 0.0
  %255 = vmatpush1.msra.mxu0 0.0
  %256 = vmatprep.subr.mxu0 0.0
  %257 = vmatpush1.msra.mxu0 0.0
  %258 = vmatprep.subr.mxu0 0.0
  %259 = vmatpush1.msra.mxu0 0.0
  %260 = vmatprep.subr.mxu0 0.0
  %261 = vmatpush1.msra.mxu0 0.0
  %262 = vmatprep.subr.mxu0 0.0
  %263 = vmatpush1.msra.mxu0 0.0
  %264 = vmatprep.subr.mxu0 0.0
  %265 = vmatpush1.msra.mxu0 0.0
  %266 = vmatprep.subr.mxu0 0.0
  %267 = vmatpush1.msra.mxu0 0.0
  %268 = vmatprep.subr.mxu0 0.0
  %269 = vmatpush1.msra.mxu0 0.0
  %270 = vmatprep.subr.mxu0 0.0
  %271 = vmatpush1.msra.mxu0 0.0
  %272 = vmatprep.subr.mxu0 0.0
  %273 = vmatpush1.msra.mxu0 0.0
  %274 = vmatprep.subr.mxu0 0.0
  %275 = vmatpush1.msra.mxu0 0.0
  %276 = vmatprep.subr.mxu0 0.0
  %277 = vmatpush1.msra.mxu0 0.0
  %278 = vmatprep.subr.mxu0 0.0
  %279 = vmatpush1.msra.mxu0 0.0
  %280 = vmatprep.subr.mxu0 0.0
  %281 = vmatpush1.msra.mxu0 0.0
  %282 = vmatprep.subr.mxu0 0.0
  %283 = vmatpush1.msra.mxu0 0.0
  %284 = vmatprep.subr.mxu0 0.0
  %285 = vmatpush1.msra.mxu0 0.0
  %286 = vmatprep.subr.mxu0 0.0
  %287 = vmatpush1.msra.mxu0 0.0
  %288 = vmatprep.subr.mxu0 0.0
  %289 = vmatpush1.msra.mxu0 0.0
  %290 = vmatprep.subr.mxu0 0.0
  %291 = vmatpush1.msra.mxu0 0.0
  %292 = vmatprep.subr.mxu0 0.0
  %293 = vmatpush1.msra.mxu0 0.0
  %294 = vmatprep.mubr.f32.mxu0 0.0
  %295 = vmatmul.mubr.f32.gmra.mrb[0].mxu0 %v228
  %v296 = vpop.f32.mrb[0].mxu0
  %v297 = vadd.f32 0.0, %v296
  %v298 = vpop.f32.mrb[0].mxu0
  %v299 = vadd.f32 0.0, %v298
  %300 = vdwg.mxu0
  %v301 = vadd.f32 %v224, %v297
  %v302 = vadd.f32 %v225, %v299
  %v303 = vxor.u32 %v301, 2147483648
  %v304 = vxor.u32 %v302, 2147483648
  %v305 = vmul.f32 %v303, 1.442695
  %v306 = vpow.pop %v305
  %v307 = vmul.f32 %v304, 1.442695
  %v308 = vpow.pop %v307
  %v309 = vadd.f32 %v306, 1.0
  %v310 = vadd.f32 %v308, 1.0
  %v311 = vrcp.pop %v309
  %v312 = vmul.f32 1.0, %v311
  %v313 = vrcp.pop %v310
  %v314 = vmul.f32 1.0, %v313
  %v315 = vtanh.pop %v302
  %v316 = vmul.f32 %v312, 0.0
  %v317 = vmul.f32 %v312, %v315
  %319 = vrot.lane.b32.xlu0 %v317, 64
  %v320 = vpop.permute.xlu0 %319
  %v322 = vadd.f32 %v316, %v320
  %v323 = vtanh.pop %v322
  %v324 = vmul.f32 %v314, %v323
  %s325 = smul.u32 1, 2
  %s326 = smul.addr %s325, 8
  %s327 = scalar_lea.vmem [#allocation2], %s326
  %v328 = vld [vmem:[%s327] sm:$0xff]
  %v329 = vld [vmem:[%s327 + $0x8] sm:$0xff]
  %331 = vrot.lane.b32.xlu0 %v324, 64
  %v332 = vpop.permute.xlu0 %331
  %v333 = vsel %vm226, %v332, 0
  %335 = vmatprep.subr.mxu0 %v206
  %336 = vmatpush1.msra.mxu0 %v205
  %337 = vmatprep.subr.mxu0 %v208
  %338 = vmatpush1.msra.mxu0 %v207
  %339 = vmatprep.subr.mxu0 %v210
  %340 = vmatpush1.msra.mxu0 %v209
  %341 = vmatprep.subr.mxu0 %v212
  %342 = vmatpush1.msra.mxu0 %v211
  %343 = vmatprep.subr.mxu0 %v214
  %344 = vmatpush1.msra.mxu0 %v213
  %345 = vmatprep.subr.mxu0 %v216
  %346 = vmatpush1.msra.mxu0 %v215
  %347 = vmatprep.subr.mxu0 %v218
  %348 = vmatpush1.msra.mxu0 %v217
  %349 = vmatprep.subr.mxu0 %v220
  %350 = vmatpush1.msra.mxu0 %v219
  %351 = vmatprep.subr.mxu0 0.0
  %352 = vmatpush1.msra.mxu0 0.0
  %353 = vmatprep.subr.mxu0 0.0
  %354 = vmatpush1.msra.mxu0 0.0
  %355 = vmatprep.subr.mxu0 0.0
  %356 = vmatpush1.msra.mxu0 0.0
  %357 = vmatprep.subr.mxu0 0.0
  %358 = vmatpush1.msra.mxu0 0.0
  %359 = vmatprep.subr.mxu0 0.0
  %360 = vmatpush1.msra.mxu0 0.0
  %361 = vmatprep.subr.mxu0 0.0
  %362 = vmatpush1.msra.mxu0 0.0
  %363 = vmatprep.subr.mxu0 0.0
  %364 = vmatpush1.msra.mxu0 0.0
  %365 = vmatprep.subr.mxu0 0.0
  %366 = vmatpush1.msra.mxu0 0.0
  %367 = vmatprep.subr.mxu0 0.0
  %368 = vmatpush1.msra.mxu0 0.0
  %369 = vmatprep.subr.mxu0 0.0
  %370 = vmatpush1.msra.mxu0 0.0
  %371 = vmatprep.subr.mxu0 0.0
  %372 = vmatpush1.msra.mxu0 0.0
  %373 = vmatprep.subr.mxu0 0.0
  %374 = vmatpush1.msra.mxu0 0.0
  %375 = vmatprep.subr.mxu0 0.0
  %376 = vmatpush1.msra.mxu0 0.0
  %377 = vmatprep.subr.mxu0 0.0
  %378 = vmatpush1.msra.mxu0 0.0
  %379 = vmatprep.subr.mxu0 0.0
  %380 = vmatpush1.msra.mxu0 0.0
  %381 = vmatprep.subr.mxu0 0.0
  %382 = vmatpush1.msra.mxu0 0.0
  %383 = vmatprep.subr.mxu0 0.0
  %384 = vmatpush1.msra.mxu0 0.0
  %385 = vmatprep.subr.mxu0 0.0
  %386 = vmatpush1.msra.mxu0 0.0
  %387 = vmatprep.subr.mxu0 0.0
  %388 = vmatpush1.msra.mxu0 0.0
  %389 = vmatprep.subr.mxu0 0.0
  %390 = vmatpush1.msra.mxu0 0.0
  %391 = vmatprep.subr.mxu0 0.0
  %392 = vmatpush1.msra.mxu0 0.0
  %393 = vmatprep.subr.mxu0 0.0
  %394 = vmatpush1.msra.mxu0 0.0
  %395 = vmatprep.subr.mxu0 0.0
  %396 = vmatpush1.msra.mxu0 0.0
  %397 = vmatprep.subr.mxu0 0.0
  %398 = vmatpush1.msra.mxu0 0.0
  %399 = vmatprep.mubr.f32.mxu0 0.0
  %400 = vmatmul.mubr.f32.gmra.mrb[0].mxu0 %v333
  %v401 = vpop.f32.mrb[0].mxu0
  %v402 = vadd.f32 0.0, %v401
  %v403 = vpop.f32.mrb[0].mxu0
  %v404 = vadd.f32 0.0, %v403
  %405 = vdwg.mxu0
  %v406 = vadd.f32 %v328, %v402
  %v407 = vadd.f32 %v329, %v404
  %v408 = vxor.u32 %v406, 2147483648
  %v409 = vxor.u32 %v407, 2147483648
  %v410 = vmul.f32 %v408, 1.442695
  %v411 = vpow.pop %v410
  %v412 = vmul.f32 %v409, 1.442695
  %v413 = vpow.pop %v412
  %v414 = vadd.f32 %v411, 1.0
  %v415 = vadd.f32 %v413, 1.0
  %v416 = vrcp.pop %v414
  %v417 = vmul.f32 1.0, %v416
  %v418 = vrcp.pop %v415
  %v419 = vmul.f32 1.0, %v418
  %v420 = vtanh.pop %v407
  %v421 = vmul.f32 %v417, %v322
  %v422 = vmul.f32 %v417, %v420
  %424 = vrot.lane.b32.xlu0 %v422, 64
  %v425 = vpop.permute.xlu0 %424
  %v427 = vadd.f32 %v421, %v425
  %v428 = vtanh.pop %v427
  %v429 = vmul.f32 %v419, %v428
  %s430 = smul.u32 2, 2
  %s431 = smul.addr %s430, 8
  %s432 = scalar_lea.vmem [#allocation2], %s431
  %v433 = vld [vmem:[%s432] sm:$0xff]
  %v434 = vld [vmem:[%s432 + $0x8] sm:$0xff]
  %436 = vrot.lane.b32.xlu0 %v429, 64
  %v437 = vpop.permute.xlu0 %436
  %v438 = vsel %vm226, %v437, 0
  %440 = vmatprep.subr.mxu0 %v206
  %441 = vmatpush1.msra.mxu0 %v205
  %442 = vmatprep.subr.mxu0 %v208
  %443 = vmatpush1.msra.mxu0 %v207
  %444 = vmatprep.subr.mxu0 %v210
  %445 = vmatpush1.msra.mxu0 %v209
  %446 = vmatprep.subr.mxu0 %v212
  %447 = vmatpush1.msra.mxu0 %v211
  %448 = vmatprep.subr.mxu0 %v214
  %449 = vmatpush1.msra.mxu0 %v213
  %450 = vmatprep.subr.mxu0 %v216
  %451 = vmatpush1.msra.mxu0 %v215
  %452 = vmatprep.subr.mxu0 %v218
  %453 = vmatpush1.msra.mxu0 %v217
  %454 = vmatprep.subr.mxu0 %v220
  %455 = vmatpush1.msra.mxu0 %v219
  %456 = vmatprep.subr.mxu0 0.0
  %457 = vmatpush1.msra.mxu0 0.0
  %458 = vmatprep.subr.mxu0 0.0
  %459 = vmatpush1.msra.mxu0 0.0
  %460 = vmatprep.subr.mxu0 0.0
  %461 = vmatpush1.msra.mxu0 0.0
  %462 = vmatprep.subr.mxu0 0.0
  %463 = vmatpush1.msra.mxu0 0.0
  %464 = vmatprep.subr.mxu0 0.0
  %465 = vmatpush1.msra.mxu0 0.0
  %466 = vmatprep.subr.mxu0 0.0
  %467 = vmatpush1.msra.mxu0 0.0
  %468 = vmatprep.subr.mxu0 0.0
  %469 = vmatpush1.msra.mxu0 0.0
  %470 = vmatprep.subr.mxu0 0.0
  %471 = vmatpush1.msra.mxu0 0.0
  %472 = vmatprep.subr.mxu0 0.0
  %473 = vmatpush1.msra.mxu0 0.0
  %474 = vmatprep.subr.mxu0 0.0
  %475 = vmatpush1.msra.mxu0 0.0
  %476 = vmatprep.subr.mxu0 0.0
  %477 = vmatpush1.msra.mxu0 0.0
  %478 = vmatprep.subr.mxu0 0.0
  %479 = vmatpush1.msra.mxu0 0.0
  %480 = vmatprep.subr.mxu0 0.0
  %481 = vmatpush1.msra.mxu0 0.0
  %482 = vmatprep.subr.mxu0 0.0
  %483 = vmatpush1.msra.mxu0 0.0
  %484 = vmatprep.subr.mxu0 0.0
  %485 = vmatpush1.msra.mxu0 0.0
  %486 = vmatprep.subr.mxu0 0.0
  %487 = vmatpush1.msra.mxu0 0.0
  %488 = vmatprep.subr.mxu0 0.0
  %489 = vmatpush1.msra.mxu0 0.0
  %490 = vmatprep.subr.mxu0 0.0
  %491 = vmatpush1.msra.mxu0 0.0
  %492 = vmatprep.subr.mxu0 0.0
  %493 = vmatpush1.msra.mxu0 0.0
  %494 = vmatprep.subr.mxu0 0.0
  %495 = vmatpush1.msra.mxu0 0.0
  %496 = vmatprep.subr.mxu0 0.0
  %497 = vmatpush1.msra.mxu0 0.0
  %498 = vmatprep.subr.mxu0 0.0
  %499 = vmatpush1.msra.mxu0 0.0
  %500 = vmatprep.subr.mxu0 0.0
  %501 = vmatpush1.msra.mxu0 0.0
  %502 = vmatprep.subr.mxu0 0.0
  %503 = vmatpush1.msra.mxu0 0.0
  %504 = vmatprep.mubr.f32.mxu0 0.0
  %505 = vmatmul.mubr.f32.gmra.mrb[0].mxu0 %v438
  %v506 = vpop.f32.mrb[0].mxu0
  %v507 = vadd.f32 0.0, %v506
  %v508 = vpop.f32.mrb[0].mxu0
  %v509 = vadd.f32 0.0, %v508
  %510 = vdwg.mxu0
  %v511 = vadd.f32 %v433, %v507
  %v512 = vadd.f32 %v434, %v509
  %v513 = vxor.u32 %v511, 2147483648
  %v514 = vxor.u32 %v512, 2147483648
  %v515 = vmul.f32 %v513, 1.442695
  %v516 = vpow.pop %v515
  %v517 = vmul.f32 %v514, 1.442695
  %v518 = vpow.pop %v517
  %v519 = vadd.f32 %v516, 1.0
  %v520 = vadd.f32 %v518, 1.0
  %v521 = vrcp.pop %v519
  %v522 = vmul.f32 1.0, %v521
  %v523 = vrcp.pop %v520
  %v524 = vmul.f32 1.0, %v523
  %v525 = vtanh.pop %v512
  %v526 = vmul.f32 %v522, %v427
  %v527 = vmul.f32 %v522, %v525
  %529 = vrot.lane.b32.xlu0 %v527, 64
  %v530 = vpop.permute.xlu0 %529
  %v532 = vadd.f32 %v526, %v530
  %v533 = vtanh.pop %v532
  %v534 = vmul.f32 %v524, %v533
  %s535 = smul.u32 3, 2
  %s536 = smul.addr %s535, 8
  %s537 = scalar_lea.vmem [#allocation2], %s536
  %v538 = vld [vmem:[%s537] sm:$0xff]
  %v539 = vld [vmem:[%s537 + $0x8] sm:$0xff]
  %541 = vrot.lane.b32.xlu0 %v534, 64
  %v542 = vpop.permute.xlu0 %541
  %v543 = vsel %vm226, %v542, 0
  %545 = vmatprep.subr.mxu0 %v206
  %546 = vmatpush1.msra.mxu0 %v205
  %547 = vmatprep.subr.mxu0 %v208
  %548 = vmatpush1.msra.mxu0 %v207
  %549 = vmatprep.subr.mxu0 %v210
  %550 = vmatpush1.msra.mxu0 %v209
  %551 = vmatprep.subr.mxu0 %v212
  %552 = vmatpush1.msra.mxu0 %v211
  %553 = vmatprep.subr.mxu0 %v214
  %554 = vmatpush1.msra.mxu0 %v213
  %555 = vmatprep.subr.mxu0 %v216
  %556 = vmatpush1.msra.mxu0 %v215
  %557 = vmatprep.subr.mxu0 %v218
  %558 = vmatpush1.msra.mxu0 %v217
  %559 = vmatprep.subr.mxu0 %v220
  %560 = vmatpush1.msra.mxu0 %v219
  %561 = vmatprep.subr.mxu0 0.0
  %562 = vmatpush1.msra.mxu0 0.0
  %563 = vmatprep.subr.mxu0 0.0
  %564 = vmatpush1.msra.mxu0 0.0
  %565 = vmatprep.subr.mxu0 0.0
  %566 = vmatpush1.msra.mxu0 0.0
  %567 = vmatprep.subr.mxu0 0.0
  %568 = vmatpush1.msra.mxu0 0.0
  %569 = vmatprep.subr.mxu0 0.0
  %570 = vmatpush1.msra.mxu0 0.0
  %571 = vmatprep.subr.mxu0 0.0
  %572 = vmatpush1.msra.mxu0 0.0
  %573 = vmatprep.subr.mxu0 0.0
  %574 = vmatpush1.msra.mxu0 0.0
  %575 = vmatprep.subr.mxu0 0.0
  %576 = vmatpush1.msra.mxu0 0.0
  %577 = vmatprep.subr.mxu0 0.0
  %578 = vmatpush1.msra.mxu0 0.0
  %579 = vmatprep.subr.mxu0 0.0
  %580 = vmatpush1.msra.mxu0 0.0
  %581 = vmatprep.subr.mxu0 0.0
  %582 = vmatpush1.msra.mxu0 0.0
  %583 = vmatprep.subr.mxu0 0.0
  %584 = vmatpush1.msra.mxu0 0.0
  %585 = vmatprep.subr.mxu0 0.0
  %586 = vmatpush1.msra.mxu0 0.0
  %587 = vmatprep.subr.mxu0 0.0
  %588 = vmatpush1.msra.mxu0 0.0
  %589 = vmatprep.subr.mxu0 0.0
  %590 = vmatpush1.msra.mxu0 0.0
  %591 = vmatprep.subr.mxu0 0.0
  %592 = vmatpush1.msra.mxu0 0.0
  %593 = vmatprep.subr.mxu0 0.0
  %594 = vmatpush1.msra.mxu0 0.0
  %595 = vmatprep.subr.mxu0 0.0
  %596 = vmatpush1.msra.mxu0 0.0
  %597 = vmatprep.subr.mxu0 0.0
  %598 = vmatpush1.msra.mxu0 0.0
  %599 = vmatprep.subr.mxu0 0.0
  %600 = vmatpush1.msra.mxu0 0.0
  %601 = vmatprep.subr.mxu0 0.0
  %602 = vmatpush1.msra.mxu0 0.0
  %603 = vmatprep.subr.mxu0 0.0
  %604 = vmatpush1.msra.mxu0 0.0
  %605 = vmatprep.subr.mxu0 0.0
  %606 = vmatpush1.msra.mxu0 0.0
  %607 = vmatprep.subr.mxu0 0.0
  %608 = vmatpush1.msra.mxu0 0.0
  %609 = vmatprep.mubr.f32.mxu0 0.0
  %610 = vmatmul.mubr.f32.gmra.mrb[0].mxu0 %v543
  %v611 = vpop.f32.mrb[0].mxu0
  %v612 = vadd.f32 0.0, %v611
  %v613 = vpop.f32.mrb[0].mxu0
  %v614 = vadd.f32 0.0, %v613
  %615 = vdwg.mxu0
  %v616 = vadd.f32 %v538, %v612
  %v617 = vadd.f32 %v539, %v614
  %v618 = vxor.u32 %v616, 2147483648
  %v619 = vxor.u32 %v617, 2147483648
  %v620 = vmul.f32 %v618, 1.442695
  %v621 = vpow.pop %v620
  %v622 = vmul.f32 %v619, 1.442695
  %v623 = vpow.pop %v622
  %v624 = vadd.f32 %v621, 1.0
  %v625 = vadd.f32 %v623, 1.0
  %v626 = vrcp.pop %v624
  %v627 = vmul.f32 1.0, %v626
  %v628 = vrcp.pop %v625
  %v629 = vmul.f32 1.0, %v628
  %v630 = vtanh.pop %v617
  %v631 = vmul.f32 %v627, %v532
  %v632 = vmul.f32 %v627, %v630
  %634 = vrot.lane.b32.xlu0 %v632, 64
  %v635 = vpop.permute.xlu0 %634
  %v637 = vadd.f32 %v631, %v635
  %v638 = vtanh.pop %v637
  %v639 = vmul.f32 %v629, %v638
  %s640 = smul.u32 4, 2
  %s641 = smul.addr %s640, 8
  %s642 = scalar_lea.vmem [#allocation2], %s641
  %v643 = vld [vmem:[%s642] sm:$0xff]
  %v644 = vld [vmem:[%s642 + $0x8] sm:$0xff]
  %646 = vrot.lane.b32.xlu0 %v639, 64
  %v647 = vpop.permute.xlu0 %646
  %v648 = vsel %vm226, %v647, 0
  %650 = vmatprep.subr.mxu0 %v206
  %651 = vmatpush1.msra.mxu0 %v205
  %652 = vmatprep.subr.mxu0 %v208
  %653 = vmatpush1.msra.mxu0 %v207
  %654 = vmatprep.subr.mxu0 %v210
  %655 = vmatpush1.msra.mxu0 %v209
  %656 = vmatprep.subr.mxu0 %v212
  %657 = vmatpush1.msra.mxu0 %v211
  %658 = vmatprep.subr.mxu0 %v214
  %659 = vmatpush1.msra.mxu0 %v213
  %660 = vmatprep.subr.mxu0 %v216
  %661 = vmatpush1.msra.mxu0 %v215
  %662 = vmatprep.subr.mxu0 %v218
  %663 = vmatpush1.msra.mxu0 %v217
  %664 = vmatprep.subr.mxu0 %v220
  %665 = vmatpush1.msra.mxu0 %v219
  %666 = vmatprep.subr.mxu0 0.0
  %667 = vmatpush1.msra.mxu0 0.0
  %668 = vmatprep.subr.mxu0 0.0
  %669 = vmatpush1.msra.mxu0 0.0
  %670 = vmatprep.subr.mxu0 0.0
  %671 = vmatpush1.msra.mxu0 0.0
  %672 = vmatprep.subr.mxu0 0.0
  %673 = vmatpush1.msra.mxu0 0.0
  %674 = vmatprep.subr.mxu0 0.0
  %675 = vmatpush1.msra.mxu0 0.0
  %676 = vmatprep.subr.mxu0 0.0
  %677 = vmatpush1.msra.mxu0 0.0
  %678 = vmatprep.subr.mxu0 0.0
  %679 = vmatpush1.msra.mxu0 0.0
  %680 = vmatprep.subr.mxu0 0.0
  %681 = vmatpush1.msra.mxu0 0.0
  %682 = vmatprep.subr.mxu0 0.0
  %683 = vmatpush1.msra.mxu0 0.0
  %684 = vmatprep.subr.mxu0 0.0
  %685 = vmatpush1.msra.mxu0 0.0
  %686 = vmatprep.subr.mxu0 0.0
  %687 = vmatpush1.msra.mxu0 0.0
  %688 = vmatprep.subr.mxu0 0.0
  %689 = vmatpush1.msra.mxu0 0.0
  %690 = vmatprep.subr.mxu0 0.0
  %691 = vmatpush1.msra.mxu0 0.0
  %692 = vmatprep.subr.mxu0 0.0
  %693 = vmatpush1.msra.mxu0 0.0
  %694 = vmatprep.subr.mxu0 0.0
  %695 = vmatpush1.msra.mxu0 0.0
  %696 = vmatprep.subr.mxu0 0.0
  %697 = vmatpush1.msra.mxu0 0.0
  %698 = vmatprep.subr.mxu0 0.0
  %699 = vmatpush1.msra.mxu0 0.0
  %700 = vmatprep.subr.mxu0 0.0
  %701 = vmatpush1.msra.mxu0 0.0
  %702 = vmatprep.subr.mxu0 0.0
  %703 = vmatpush1.msra.mxu0 0.0
  %704 = vmatprep.subr.mxu0 0.0
  %705 = vmatpush1.msra.mxu0 0.0
  %706 = vmatprep.subr.mxu0 0.0
  %707 = vmatpush1.msra.mxu0 0.0
  %708 = vmatprep.subr.mxu0 0.0
  %709 = vmatpush1.msra.mxu0 0.0
  %710 = vmatprep.subr.mxu0 0.0
  %711 = vmatpush1.msra.mxu0 0.0
  %712 = vmatprep.subr.mxu0 0.0
  %713 = vmatpush1.msra.mxu0 0.0
  %714 = vmatprep.mubr.f32.mxu0 0.0
  %715 = vmatmul.mubr.f32.gmra.mrb[0].mxu0 %v648
  %v716 = vpop.f32.mrb[0].mxu0
  %v717 = vadd.f32 0.0, %v716
  %v718 = vpop.f32.mrb[0].mxu0
  %v719 = vadd.f32 0.0, %v718
  %720 = vdwg.mxu0
  %v721 = vadd.f32 %v643, %v717
  %v722 = vadd.f32 %v644, %v719
  %v723 = vxor.u32 %v721, 2147483648
  %v724 = vxor.u32 %v722, 2147483648
  %v725 = vmul.f32 %v723, 1.442695
  %v726 = vpow.pop %v725
  %v727 = vmul.f32 %v724, 1.442695
  %v728 = vpow.pop %v727
  %v729 = vadd.f32 %v726, 1.0
  %v730 = vadd.f32 %v728, 1.0
  %v731 = vrcp.pop %v729
  %v732 = vmul.f32 1.0, %v731
  %v733 = vrcp.pop %v730
  %v734 = vmul.f32 1.0, %v733
  %v735 = vtanh.pop %v722
  %v736 = vmul.f32 %v732, %v637
  %v737 = vmul.f32 %v732, %v735
  %739 = vrot.lane.b32.xlu0 %v737, 64
  %v740 = vpop.permute.xlu0 %739
  %v742 = vadd.f32 %v736, %v740
  %v743 = vtanh.pop %v742
  %v744 = vmul.f32 %v734, %v743
  %s745 = smul.u32 5, 2
  %s746 = smul.addr %s745, 8
  %s747 = scalar_lea.vmem [#allocation2], %s746
  %v748 = vld [vmem:[%s747] sm:$0xff]
  %v749 = vld [vmem:[%s747 + $0x8] sm:$0xff]
  %751 = vrot.lane.b32.xlu0 %v744, 64
  %v752 = vpop.permute.xlu0 %751
  %v753 = vsel %vm226, %v752, 0
  %755 = vmatprep.subr.mxu0 %v206
  %756 = vmatpush1.msra.mxu0 %v205
  %757 = vmatprep.subr.mxu0 %v208
  %758 = vmatpush1.msra.mxu0 %v207
  %759 = vmatprep.subr.mxu0 %v210
  %760 = vmatpush1.msra.mxu0 %v209
  %761 = vmatprep.subr.mxu0 %v212
  %762 = vmatpush1.msra.mxu0 %v211
  %763 = vmatprep.subr.mxu0 %v214
  %764 = vmatpush1.msra.mxu0 %v213
  %765 = vmatprep.subr.mxu0 %v216
  %766 = vmatpush1.msra.mxu0 %v215
  %767 = vmatprep.subr.mxu0 %v218
  %768 = vmatpush1.msra.mxu0 %v217
  %769 = vmatprep.subr.mxu0 %v220
  %770 = vmatpush1.msra.mxu0 %v219
  %771 = vmatprep.subr.mxu0 0.0
  %772 = vmatpush1.msra.mxu0 0.0
  %773 = vmatprep.subr.mxu0 0.0
  %774 = vmatpush1.msra.mxu0 0.0
  %775 = vmatprep.subr.mxu0 0.0
  %776 = vmatpush1.msra.mxu0 0.0
  %777 = vmatprep.subr.mxu0 0.0
  %778 = vmatpush1.msra.mxu0 0.0
  %779 = vmatprep.subr.mxu0 0.0
  %780 = vmatpush1.msra.mxu0 0.0
  %781 = vmatprep.subr.mxu0 0.0
  %782 = vmatpush1.msra.mxu0 0.0
  %783 = vmatprep.subr.mxu0 0.0
  %784 = vmatpush1.msra.mxu0 0.0
  %785 = vmatprep.subr.mxu0 0.0
  %786 = vmatpush1.msra.mxu0 0.0
  %787 = vmatprep.subr.mxu0 0.0
  %788 = vmatpush1.msra.mxu0 0.0
  %789 = vmatprep.subr.mxu0 0.0
  %790 = vmatpush1.msra.mxu0 0.0
  %791 = vmatprep.subr.mxu0 0.0
  %792 = vmatpush1.msra.mxu0 0.0
  %793 = vmatprep.subr.mxu0 0.0
  %794 = vmatpush1.msra.mxu0 0.0
  %795 = vmatprep.subr.mxu0 0.0
  %796 = vmatpush1.msra.mxu0 0.0
  %797 = vmatprep.subr.mxu0 0.0
  %798 = vmatpush1.msra.mxu0 0.0
  %799 = vmatprep.subr.mxu0 0.0
  %800 = vmatpush1.msra.mxu0 0.0
  %801 = vmatprep.subr.mxu0 0.0
  %802 = vmatpush1.msra.mxu0 0.0
  %803 = vmatprep.subr.mxu0 0.0
  %804 = vmatpush1.msra.mxu0 0.0
  %805 = vmatprep.subr.mxu0 0.0
  %806 = vmatpush1.msra.mxu0 0.0
  %807 = vmatprep.subr.mxu0 0.0
  %808 = vmatpush1.msra.mxu0 0.0
  %809 = vmatprep.subr.mxu0 0.0
  %810 = vmatpush1.msra.mxu0 0.0
  %811 = vmatprep.subr.mxu0 0.0
  %812 = vmatpush1.msra.mxu0 0.0
  %813 = vmatprep.subr.mxu0 0.0
  %814 = vmatpush1.msra.mxu0 0.0
  %815 = vmatprep.subr.mxu0 0.0
  %816 = vmatpush1.msra.mxu0 0.0
  %817 = vmatprep.subr.mxu0 0.0
  %818 = vmatpush1.msra.mxu0 0.0
  %819 = vmatprep.mubr.f32.mxu0 0.0
  %820 = vmatmul.mubr.f32.gmra.mrb[0].mxu0 %v753
  %v821 = vpop.f32.mrb[0].mxu0
  %v822 = vadd.f32 0.0, %v821
  %v823 = vpop.f32.mrb[0].mxu0
  %v824 = vadd.f32 0.0, %v823
  %825 = vdwg.mxu0
  %v826 = vadd.f32 %v748, %v822
  %v827 = vadd.f32 %v749, %v824
  %v828 = vxor.u32 %v826, 2147483648
  %v829 = vxor.u32 %v827, 2147483648
  %v830 = vmul.f32 %v828, 1.442695
  %v831 = vpow.pop %v830
  %v832 = vmul.f32 %v829, 1.442695
  %v833 = vpow.pop %v832
  %v834 = vadd.f32 %v831, 1.0
  %v835 = vadd.f32 %v833, 1.0
  %v836 = vrcp.pop %v834
  %v837 = vmul.f32 1.0, %v836
  %v838 = vrcp.pop %v835
  %v839 = vmul.f32 1.0, %v838
  %v840 = vtanh.pop %v827
  %v841 = vmul.f32 %v837, %v742
  %v842 = vmul.f32 %v837, %v840
  %844 = vrot.lane.b32.xlu0 %v842, 64
  %v845 = vpop.permute.xlu0 %844
  %v847 = vadd.f32 %v841, %v845
  %v848 = vtanh.pop %v847
  %v849 = vmul.f32 %v839, %v848
  %s850 = smul.u32 6, 2
  %s851 = smul.addr %s850, 8
  %s852 = scalar_lea.vmem [#allocation2], %s851
  %v853 = vld [vmem:[%s852] sm:$0xff]
  %v854 = vld [vmem:[%s852 + $0x8] sm:$0xff]
  %856 = vrot.lane.b32.xlu0 %v849, 64
  %v857 = vpop.permute.xlu0 %856
  %v858 = vsel %vm226, %v857, 0
  %860 = vmatprep.subr.mxu0 %v206
  %861 = vmatpush1.msra.mxu0 %v205
  %862 = vmatprep.subr.mxu0 %v208
  %863 = vmatpush1.msra.mxu0 %v207
  %864 = vmatprep.subr.mxu0 %v210
  %865 = vmatpush1.msra.mxu0 %v209
  %866 = vmatprep.subr.mxu0 %v212
  %867 = vmatpush1.msra.mxu0 %v211
  %868 = vmatprep.subr.mxu0 %v214
  %869 = vmatpush1.msra.mxu0 %v213
  %870 = vmatprep.subr.mxu0 %v216
  %871 = vmatpush1.msra.mxu0 %v215
  %872 = vmatprep.subr.mxu0 %v218
  %873 = vmatpush1.msra.mxu0 %v217
  %874 = vmatprep.subr.mxu0 %v220
  %875 = vmatpush1.msra.mxu0 %v219
  %876 = vmatprep.subr.mxu0 0.0
  %877 = vmatpush1.msra.mxu0 0.0
  %878 = vmatprep.subr.mxu0 0.0
  %879 = vmatpush1.msra.mxu0 0.0
  %880 = vmatprep.subr.mxu0 0.0
  %881 = vmatpush1.msra.mxu0 0.0
  %882 = vmatprep.subr.mxu0 0.0
  %883 = vmatpush1.msra.mxu0 0.0
  %884 = vmatprep.subr.mxu0 0.0
  %885 = vmatpush1.msra.mxu0 0.0
  %886 = vmatprep.subr.mxu0 0.0
  %887 = vmatpush1.msra.mxu0 0.0
  %888 = vmatprep.subr.mxu0 0.0
  %889 = vmatpush1.msra.mxu0 0.0
  %890 = vmatprep.subr.mxu0 0.0
  %891 = vmatpush1.msra.mxu0 0.0
  %892 = vmatprep.subr.mxu0 0.0
  %893 = vmatpush1.msra.mxu0 0.0
  %894 = vmatprep.subr.mxu0 0.0
  %895 = vmatpush1.msra.mxu0 0.0
  %896 = vmatprep.subr.mxu0 0.0
  %897 = vmatpush1.msra.mxu0 0.0
  %898 = vmatprep.subr.mxu0 0.0
  %899 = vmatpush1.msra.mxu0 0.0
  %900 = vmatprep.subr.mxu0 0.0
  %901 = vmatpush1.msra.mxu0 0.0
  %902 = vmatprep.subr.mxu0 0.0
  %903 = vmatpush1.msra.mxu0 0.0
  %904 = vmatprep.subr.mxu0 0.0
  %905 = vmatpush1.msra.mxu0 0.0
  %906 = vmatprep.subr.mxu0 0.0
  %907 = vmatpush1.msra.mxu0 0.0
  %908 = vmatprep.subr.mxu0 0.0
  %909 = vmatpush1.msra.mxu0 0.0
  %910 = vmatprep.subr.mxu0 0.0
  %911 = vmatpush1.msra.mxu0 0.0
  %912 = vmatprep.subr.mxu0 0.0
  %913 = vmatpush1.msra.mxu0 0.0
  %914 = vmatprep.subr.mxu0 0.0
  %915 = vmatpush1.msra.mxu0 0.0
  %916 = vmatprep.subr.mxu0 0.0
  %917 = vmatpush1.msra.mxu0 0.0
  %918 = vmatprep.subr.mxu0 0.0
  %919 = vmatpush1.msra.mxu0 0.0
  %920 = vmatprep.subr.mxu0 0.0
  %921 = vmatpush1.msra.mxu0 0.0
  %922 = vmatprep.subr.mxu0 0.0
  %923 = vmatpush1.msra.mxu0 0.0
  %924 = vmatprep.mubr.f32.mxu0 0.0
  %925 = vmatmul.mubr.f32.gmra.mrb[0].mxu0 %v858
  %v926 = vpop.f32.mrb[0].mxu0
  %v927 = vadd.f32 0.0, %v926
  %v928 = vpop.f32.mrb[0].mxu0
  %v929 = vadd.f32 0.0, %v928
  %930 = vdwg.mxu0
  %v931 = vadd.f32 %v853, %v927
  %v932 = vadd.f32 %v854, %v929
  %v933 = vxor.u32 %v931, 2147483648
  %v934 = vxor.u32 %v932, 2147483648
  %v935 = vmul.f32 %v933, 1.442695
  %v936 = vpow.pop %v935
  %v937 = vmul.f32 %v934, 1.442695
  %v938 = vpow.pop %v937
  %v939 = vadd.f32 %v936, 1.0
  %v940 = vadd.f32 %v938, 1.0
  %v941 = vrcp.pop %v939
  %v942 = vmul.f32 1.0, %v941
  %v943 = vrcp.pop %v940
  %v944 = vmul.f32 1.0, %v943
  %v945 = vtanh.pop %v932
  %v946 = vmul.f32 %v942, %v847
  %v947 = vmul.f32 %v942, %v945
  %949 = vrot.lane.b32.xlu0 %v947, 64
  %v950 = vpop.permute.xlu0 %949
  %v952 = vadd.f32 %v946, %v950
  %v953 = vtanh.pop %v952
  %v954 = vmul.f32 %v944, %v953
  %s955 = smul.u32 7, 2
  %s956 = smul.addr %s955, 8
  %s957 = scalar_lea.vmem [#allocation2], %s956
  %v958 = vld [vmem:[%s957] sm:$0xff]
  %v959 = vld [vmem:[%s957 + $0x8] sm:$0xff]
  %961 = vrot.lane.b32.xlu0 %v954, 64
  %v962 = vpop.permute.xlu0 %961
  %v963 = vsel %vm226, %v962, 0
  %965 = vmatprep.subr.mxu0 %v206
  %966 = vmatpush1.msra.mxu0 %v205
  %967 = vmatprep.subr.mxu0 %v208
  %968 = vmatpush1.msra.mxu0 %v207
  %969 = vmatprep.subr.mxu0 %v210
  %970 = vmatpush1.msra.mxu0 %v209
  %971 = vmatprep.subr.mxu0 %v212
  %972 = vmatpush1.msra.mxu0 %v211
  %973 = vmatprep.subr.mxu0 %v214
  %974 = vmatpush1.msra.mxu0 %v213
  %975 = vmatprep.subr.mxu0 %v216
  %976 = vmatpush1.msra.mxu0 %v215
  %977 = vmatprep.subr.mxu0 %v218
  %978 = vmatpush1.msra.mxu0 %v217
  %979 = vmatprep.subr.mxu0 %v220
  %980 = vmatpush1.msra.mxu0 %v219
  %981 = vmatprep.subr.mxu0 0.0
  %982 = vmatpush1.msra.mxu0 0.0
  %983 = vmatprep.subr.mxu0 0.0
  %984 = vmatpush1.msra.mxu0 0.0
  %985 = vmatprep.subr.mxu0 0.0
  %986 = vmatpush1.msra.mxu0 0.0
  %987 = vmatprep.subr.mxu0 0.0
  %988 = vmatpush1.msra.mxu0 0.0
  %989 = vmatprep.subr.mxu0 0.0
  %990 = vmatpush1.msra.mxu0 0.0
  %991 = vmatprep.subr.mxu0 0.0
  %992 = vmatpush1.msra.mxu0 0.0
  %993 = vmatprep.subr.mxu0 0.0
  %994 = vmatpush1.msra.mxu0 0.0
  %995 = vmatprep.subr.mxu0 0.0
  %996 = vmatpush1.msra.mxu0 0.0
  %997 = vmatprep.subr.mxu0 0.0
  %998 = vmatpush1.msra.mxu0 0.0
  %999 = vmatprep.subr.mxu0 0.0
  %1000 = vmatpush1.msra.mxu0 0.0
  %1001 = vmatprep.subr.mxu0 0.0
  %1002 = vmatpush1.msra.mxu0 0.0
  %1003 = vmatprep.subr.mxu0 0.0
  %1004 = vmatpush1.msra.mxu0 0.0
  %1005 = vmatprep.subr.mxu0 0.0
  %1006 = vmatpush1.msra.mxu0 0.0
  %1007 = vmatprep.subr.mxu0 0.0
  %1008 = vmatpush1.msra.mxu0 0.0
  %1009 = vmatprep.subr.mxu0 0.0
  %1010 = vmatpush1.msra.mxu0 0.0
  %1011 = vmatprep.subr.mxu0 0.0
  %1012 = vmatpush1.msra.mxu0 0.0
  %1013 = vmatprep.subr.mxu0 0.0
  %1014 = vmatpush1.msra.mxu0 0.0
  %1015 = vmatprep.subr.mxu0 0.0
  %1016 = vmatpush1.msra.mxu0 0.0
  %1017 = vmatprep.subr.mxu0 0.0
  %1018 = vmatpush1.msra.mxu0 0.0
  %1019 = vmatprep.subr.mxu0 0.0
  %1020 = vmatpush1.msra.mxu0 0.0
  %1021 = vmatprep.subr.mxu0 0.0
  %1022 = vmatpush1.msra.mxu0 0.0
  %1023 = vmatprep.subr.mxu0 0.0
  %1024 = vmatpush1.msra.mxu0 0.0
  %1025 = vmatprep.subr.mxu0 0.0
  %1026 = vmatpush1.msra.mxu0 0.0
  %1027 = vmatprep.subr.mxu0 0.0
  %1028 = vmatpush1.msra.mxu0 0.0
  %1029 = vmatprep.mubr.f32.mxu0 0.0
  %1030 = vmatmul.mubr.f32.gmra.mrb[0].mxu0 %v963
  %v1031 = vpop.f32.mrb[0].mxu0
  %v1032 = vadd.f32 0.0, %v1031
  %v1033 = vpop.f32.mrb[0].mxu0
  %v1034 = vadd.f32 0.0, %v1033
  %1035 = vdwg.mxu0
  %v1036 = vadd.f32 %v958, %v1032
  %v1037 = vadd.f32 %v959, %v1034
  %v1038 = vxor.u32 %v1036, 2147483648
  %v1039 = vxor.u32 %v1037, 2147483648
  %v1040 = vmul.f32 %v1038, 1.442695
  %v1041 = vpow.pop %v1040
  %v1042 = vmul.f32 %v1039, 1.442695
  %v1043 = vpow.pop %v1042
  %v1044 = vadd.f32 %v1041, 1.0
  %v1045 = vadd.f32 %v1043, 1.0
  %v1046 = vrcp.pop %v1044
  %v1047 = vmul.f32 1.0, %v1046
  %v1048 = vrcp.pop %v1045
  %v1049 = vmul.f32 1.0, %v1048
  %v1050 = vtanh.pop %v1037
  %v1051 = vmul.f32 %v1047, %v952
  %v1052 = vmul.f32 %v1047, %v1050
  %1054 = vrot.lane.b32.xlu0 %v1052, 64
  %v1055 = vpop.permute.xlu0 %1054
  %v1057 = vadd.f32 %v1051, %v1055
  %v1058 = vtanh.pop %v1057
  %v1059 = vmul.f32 %v1049, %v1058
  %v1060 = vld [vmem:[%s4] sm:$0xff]
  %v1061 = vld [vmem:[%s4 + $0x8] sm:$0xff]
  %v1062 = vld [vmem:[%s4 + $0x10] sm:$0xff]
  %v1063 = vld [vmem:[%s4 + $0x18] sm:$0xff]
  %v1064 = vld [vmem:[%s4 + $0x20] sm:$0xff]
  %v1065 = vld [vmem:[%s4 + $0x28] sm:$0xff]
  %v1066 = vld [vmem:[%s4 + $0x30] sm:$0xff]
  %v1067 = vld [vmem:[%s4 + $0x38] sm:$0xff]
  %v1068 = vld [vmem:[%s5] sm:$0x1]
  %v1070 = vlaneseq
  %v1071 = vshrl.u32 %v1070, 7
  %v1072 = vsub.s32 0, %v1071
  %v1073 = vrot.slane %v1068, %v1072
  %1076 = vrot.lane.b32.xlu0 %v1059, 64
  %v1077 = vpop.permute.xlu0 %1076
  %v1078 = vsel %vm226, %v1077, 0
  %1080 = vmatprep.subr.mxu0 0.0
  %1081 = vmatpush1.msra.mxu0 %v1060
  %1082 = vmatprep.subr.mxu0 0.0
  %1083 = vmatpush1.msra.mxu0 %v1061
  %1084 = vmatprep.subr.mxu0 0.0
  %1085 = vmatpush1.msra.mxu0 %v1062
  %1086 = vmatprep.subr.mxu0 0.0
  %1087 = vmatpush1.msra.mxu0 %v1063
  %1088 = vmatprep.subr.mxu0 0.0
  %1089 = vmatpush1.msra.mxu0 %v1064
  %1090 = vmatprep.subr.mxu0 0.0
  %1091 = vmatpush1.msra.mxu0 %v1065
  %1092 = vmatprep.subr.mxu0 0.0
  %1093 = vmatpush1.msra.mxu0 %v1066
  %1094 = vmatprep.subr.mxu0 0.0
  %1095 = vmatpush1.msra.mxu0 %v1067
  %1096 = vmatprep.subr.mxu0 0.0
  %1097 = vmatpush1.msra.mxu0 0.0
  %1098 = vmatprep.subr.mxu0 0.0
  %1099 = vmatpush1.msra.mxu0 0.0
  %1100 = vmatprep.subr.mxu0 0.0
  %1101 = vmatpush1.msra.mxu0 0.0
  %1102 = vmatprep.subr.mxu0 0.0
  %1103 = vmatpush1.msra.mxu0 0.0
  %1104 = vmatprep.subr.mxu0 0.0
  %1105 = vmatpush1.msra.mxu0 0.0
  %1106 = vmatprep.subr.mxu0 0.0
  %1107 = vmatpush1.msra.mxu0 0.0
  %1108 = vmatprep.subr.mxu0 0.0
  %1109 = vmatpush1.msra.mxu0 0.0
  %1110 = vmatprep.subr.mxu0 0.0
  %1111 = vmatpush1.msra.mxu0 0.0
  %1112 = vmatprep.subr.mxu0 0.0
  %1113 = vmatpush1.msra.mxu0 0.0
  %1114 = vmatprep.subr.mxu0 0.0
  %1115 = vmatpush1.msra.mxu0 0.0
  %1116 = vmatprep.subr.mxu0 0.0
  %1117 = vmatpush1.msra.mxu0 0.0
  %1118 = vmatprep.subr.mxu0 0.0
  %1119 = vmatpush1.msra.mxu0 0.0
  %1120 = vmatprep.subr.mxu0 0.0
  %1121 = vmatpush1.msra.mxu0 0.0
  %1122 = vmatprep.subr.mxu0 0.0
  %1123 = vmatpush1.msra.mxu0 0.0
  %1124 = vmatprep.subr.mxu0 0.0
  %1125 = vmatpush1.msra.mxu0 0.0
  %1126 = vmatprep.subr.mxu0 0.0
  %1127 = vmatpush1.msra.mxu0 0.0
  %1128 = vmatprep.subr.mxu0 0.0
  %1129 = vmatpush1.msra.mxu0 0.0
  %1130 = vmatprep.subr.mxu0 0.0
  %1131 = vmatpush1.msra.mxu0 0.0
  %1132 = vmatprep.subr.mxu0 0.0
  %1133 = vmatpush1.msra.mxu0 0.0
  %1134 = vmatprep.subr.mxu0 0.0
  %1135 = vmatpush1.msra.mxu0 0.0
  %1136 = vmatprep.subr.mxu0 0.0
  %1137 = vmatpush1.msra.mxu0 0.0
  %1138 = vmatprep.subr.mxu0 0.0
  %1139 = vmatpush1.msra.mxu0 0.0
  %1140 = vmatprep.subr.mxu0 0.0
  %1141 = vmatpush1.msra.mxu0 0.0
  %1142 = vmatprep.subr.mxu0 0.0
  %1143 = vmatpush1.msra.mxu0 0.0
  %1144 = vmatprep.mubr.f32.mxu0 0.0
  %1145 = vmatmul.mubr.f32.gmra.mrb[0].mxu0 %v1078
  %v1146 = vpop.f32.mrb[0].mxu0
  %v1147 = vadd.f32 %v1073, %v1146
  %v1148 = vpop.f32.mrb[0].mxu0
  %1149 = vdwg.mxu0
  %1150 = vmax.xlane.f32.xlu0 %v1147
  %v1151 = vpop.xlane.xlu0 %1150
  %v1152 = vsub.f32 %v1147, %v1151
  %v1153 = vmul.f32 %v1152, 1.442695
  %v1154 = vpow.pop %v1153
  %1155 = vadd.xlane.f32.xlu0 %v1154
  %v1156 = vpop.xlane.xlu0 %1155
  %v1157 = vlog2.pop %v1156
  %v1158 = vmul.f32 %v1157, 0.6931472
  %v1159 = vadd.f32 %v1151, %v1158
  %v1160 = vsub.f32 %v1147, %v1159
  %1161 = vst [vmem:[%s6] sm:$0xff] %v1160
  // Predicated region
  $region26: #{lstm_model_forward.2} parent=0 // pred_check
    _
  $region27: #{lstm_model_forward.2} parent=0 // pred_check_branch
    %1163 = sbr.rel (0) target = $region29
  $region28: #{lstm_model_forward.2} parent=0 // pred_region
    _
  $region29: #{lstm_model_forward.2} parent=0 // pred_fallthru
    _
  // Predicated region
  $region30: #{lstm_model_forward.2} parent=0 // pred_check
    _
  $region31: #{lstm_model_forward.2} parent=0 // pred_check_branch
    %1165 = sbr.rel (0) target = $region33
  $region32: #{lstm_model_forward.2} parent=0 // pred_region
    _
  $region33: #{lstm_model_forward.2} parent=0 // pred_fallthru
    _

</llo_original>
